<compile_context>
chip_gen: v6e
topology: v6e:2x2x1
jax: 0.10.0
libtpu: 0.0.40
codegen_flags: <defaults>
</compile_context>

<pallas_src>
import functools

import jax
import jax.numpy as jnp
import numpy as np
from jax import lax
from jax.experimental import pallas as pl
from jax.experimental.pallas import tpu as pltpu


# ---------------------------------------------------------------------------
# Kernel
# ---------------------------------------------------------------------------
def _ffn_conv_kernel(x_ref, w1t_ref, b1_ref, wc_ref, bc_ref, o_ref, *,
                     seq_len, width, pad, batch_group, out_ncw, matmul_dtype):
    """Fused Linear + bias + ReLU followed by a 'same' Conv1d over the sequence.

    x_ref:   (batch_group * T, d_model)   input rows (whole sequences)
    w1t_ref: (d_model, d_ff)              w_1.weight.T          (matmul dtype)
    b1_ref:  (1, d_ff)                    w_1.bias              (f32)
    wc_ref:  (width, d_ff, d_model)       conv weight, per tap  (matmul dtype)
    bc_ref:  (1, d_model)                 conv bias             (f32)
    o_ref:   (batch_group, d_model, T)    if out_ncw (lane-friendly T)
             (batch_group * T, d_model)   otherwise  (lane-dense NTC)
    """
    T = seq_len
    n_rows = batch_group * T

    # ---- Linear + bias + ReLU (MXU matmul, f32 accumulation / elementwise).
    x = x_ref[...].astype(matmul_dtype)
    h = jnp.dot(x, w1t_ref[...], preferred_element_type=jnp.float32)
    h = jnp.maximum(h + b1_ref[...], 0.0)                    # (n_rows, d_ff) f32

    # ---- 'same' Conv1d as `width` accumulating matmuls over shifted h:
    #        out[t] += h[t + k - pad] @ wc[k],   zero outside [0, T).
    #      Shift = single XLU sublane rotation (pltpu.roll, jnp.roll semantics)
    #      + iota row mask for the halo / batch-group boundaries.
    acc = jnp.dot(h.astype(matmul_dtype), wc_ref[pad],
                  preferred_element_type=jnp.float32) + bc_ref[...]

    if width > 1:
        row = lax.broadcasted_iota(jnp.int32, (n_rows, 1), 0)
        if batch_group > 1:
            row = row % T                      # position within each sequence
        for k in range(width):                 # static, tiny (width taps)
            s = k - pad
            if s == 0:
                continue                       # handled by the init above
            # rolled[r] = h[(r + s) mod n_rows]
            rolled = pltpu.roll(h, (-s) % n_rows, axis=0)
            valid = (row + s >= 0) & (row + s < T)     # zero halo at edges
            h_k = jnp.where(valid, rolled, 0.0).astype(matmul_dtype)
            acc = acc + jnp.dot(h_k, wc_ref[k],
                                preferred_element_type=jnp.float32)

    # ---- Store.  Dropout(p=0.3) is inference-mode => identity.
    if out_ncw:
        # T is a multiple of 128: (d_model, T) stores are lane-dense, so write
        # NCW directly (per-sequence XLU transpose of the accumulator).
        for g in range(batch_group):           # static, small
            o_ref[g] = jnp.transpose(acc[g * T:(g + 1) * T, :]).astype(o_ref.dtype)
    else:
        # Small / unaligned T: keep stores lane-dense on d_model (NTC); the NCW
        # transpose happens once outside the kernel.
        o_ref[...] = acc.astype(o_ref.dtype)


# ---------------------------------------------------------------------------
# Host-side sizing helpers
# ---------------------------------------------------------------------------
def _vmem_capacity_bytes():
    """Physical VMEM per TensorCore; conservative fallback if unavailable."""
    try:
        cap = int(pltpu.get_tpu_info().vmem_capacity_bytes)
        if cap > 0:
            return cap
    except Exception:
        pass
    return 64 * 1024 * 1024          # v7x per-TC VMEM (smallest current part)


def _vmem_step_bytes(m, d_model, d_ff, width, io_bytes, mm_bytes):
    """Per-grid-step VMEM working set for an m-row tile."""
    x_blk = 2 * m * d_model * io_bytes                   # input block (2 bufs)
    o_blk = 2 * m * d_model * io_bytes                   # output block (2 bufs)
    wgt = (d_model * d_ff + width * d_ff * d_model) * mm_bytes   # single copy
    bias = 2 * (d_ff + d_model) * 4
    h = m * d_ff * 4                                     # f32 activations
    shifted = m * d_ff * (4 + mm_bytes)                  # one rolled copy + cast
    acc = 2 * m * d_model * 4                            # accumulator + temp
    return x_blk + o_blk + wgt + bias + h + shifted + acc


def _pick_batch_group(B, T, d_model, d_ff, width, io_bytes, mm_bytes,
                      max_rows, fit_budget):
    """Largest per-step batch group that (a) divides B, (b) leaves >= 2 grid
    steps when B > 1 (so v7x's second TensorCore has work), (c) keeps blocks
    sublane-aligned, and (d) fits the VMEM budget."""
    best = None
    for bg in range(1, B + 1):
        if B % bg:
            continue
        steps = B // bg
        if B > 1 and steps < 2:
            continue
        m = bg * T
        if steps > 1 and m % 8:
            continue                    # (8, 128) block divisibility when tiled
        if bg > 1 and m > max_rows:
            continue
        if bg > 1 and _vmem_step_bytes(m, d_model, d_ff, width,
                                       io_bytes, mm_bytes) > fit_budget:
            continue
        best = bg
    if best is None:
        best = B                        # single step over the full array
    return best


# ---------------------------------------------------------------------------
# Public API
# ---------------------------------------------------------------------------
def prepare_weights(w1_weight, w1_bias, conv_weight, conv_bias, *,
                    matmul_dtype=jnp.bfloat16):
    """Host-side weight prep (call once).  MXU operands are cast to
    `matmul_dtype` (bf16 by default: 2x MXU rate + half the weight bytes on
    v6e/v7x); biases stay f32 and accumulation is always f32 in-kernel."""
    w1_weight = jnp.asarray(w1_weight)
    w1_bias = jnp.asarray(w1_bias)
    conv_weight = jnp.asarray(conv_weight)
    conv_bias = jnp.asarray(conv_bias)

    d_ff, d_model = w1_weight.shape
    out_ch, in_ch, width = conv_weight.shape
    assert in_ch == d_ff and out_ch == d_model
    mmdt = jnp.dtype(matmul_dtype)

    w1t = w1_weight.T.astype(mmdt)                               # (d_model, d_ff)
    b1 = w1_bias.reshape(1, d_ff).astype(jnp.float32)
    # wc[k, c, o] = conv_weight[o, c, k]  -> per-tap (d_ff, d_model) blocks.
    wc = jnp.transpose(conv_weight, (2, 1, 0)).astype(mmdt)      # (width, d_ff, d_model)
    bc = conv_bias.reshape(1, d_model).astype(jnp.float32)
    return dict(w1t=w1t, b1=b1, wc=wc, bc=bc,
                width=width, d_ff=d_ff, d_model=d_model)


def positionwise_conv_forward_mul(x, params):
    """x: (B, T, d_model) -> (B, d_model, T) (NCW).  Eval-mode dropout."""
    B, T, d_model = x.shape
    d_ff, width = params["d_ff"], params["width"]
    assert params["d_model"] == d_model
    assert width % 2 == 1, (
        "padding=(width-1)//2 is a 'same' convolution only for odd width")
    pad = (width - 1) // 2
    assert pad < T

    w1t, b1, wc, bc = params["w1t"], params["b1"], params["wc"], params["bc"]
    io_bytes = jnp.dtype(x.dtype).itemsize
    mm_bytes = jnp.dtype(w1t.dtype).itemsize

    # ---- Per-generation VMEM budget & tile sizing (v5e/v6e 128 MiB, v7x 64 MiB).
    vmem_cap = _vmem_capacity_bytes()
    vmem_cap_limit = vmem_cap * 3 // 4        # never above ~75% of physical VMEM
    fit_budget = vmem_cap * 6 // 10           # headroom for the fit check
    if vmem_cap >= 100 * 1024 * 1024:         # v5e / v6e class
        max_rows = 1024 if mm_bytes <= 2 else 512
    else:                                     # v7x class (64 MiB per TC)
        max_rows = 256 if mm_bytes <= 2 else 128

    bg = _pick_batch_group(B, T, d_model, d_ff, width, io_bytes, mm_bytes,
                           max_rows, fit_budget)
    grid = (B // bg,)
    m_rows = bg * T
    # TODO(synk): add a T-tiling grid axis with a (width-1)-row halo for
    # sequences where the bg=1 tile still exceeds the VMEM budget.

    est = _vmem_step_bytes(m_rows, d_model, d_ff, width, io_bytes, mm_bytes)
    vmem_limit = int(min(max(est * 3 // 2, 32 * 1024 * 1024), vmem_cap_limit))

    # Lane-dense stores: only write NCW in-kernel when T maps onto full lanes.
    out_ncw = (T % 128 == 0)

    xf = x.reshape(B * T, d_model)
    kernel = functools.partial(
        _ffn_conv_kernel, seq_len=T, width=width, pad=pad, batch_group=bg,
        out_ncw=out_ncw, matmul_dtype=w1t.dtype)

    flops = 2 * B * T * d_ff * d_model * (1 + width)
    bytes_accessed = (2 * B * T * d_model * io_bytes
                      + (d_model * d_ff + width * d_ff * d_model) * mm_bytes
                      + (d_ff + d_model) * 4)
    cost = pl.CostEstimate(flops=int(flops), bytes_accessed=int(bytes_accessed),
                           transcendentals=0)

    def _call(single_buffer_weights):
        # Grid-invariant weights/biases: hold ONE VMEM copy instead of the
        # default double buffer.
        wkw = {"pipeline_mode": pl.Buffered(1)} if single_buffer_weights else {}
        in_specs = [
            pl.BlockSpec((m_rows, d_model), lambda i: (i, 0)),
            pl.BlockSpec((d_model, d_ff), lambda i: (0, 0), **wkw),
            pl.BlockSpec((1, d_ff), lambda i: (0, 0), **wkw),
            pl.BlockSpec((width, d_ff, d_model), lambda i: (0, 0, 0), **wkw),
            pl.BlockSpec((1, d_model), lambda i: (0, 0), **wkw),
        ]
        if out_ncw:
            out_shape = jax.ShapeDtypeStruct((B, d_model, T), x.dtype)
            out_specs = pl.BlockSpec((bg, d_model, T), lambda i: (i, 0, 0))
        else:
            out_shape = jax.ShapeDtypeStruct((B * T, d_model), x.dtype)
            out_specs = pl.BlockSpec((m_rows, d_model), lambda i: (i, 0))
        return pl.pallas_call(
            kernel,
            out_shape=out_shape,
            grid_spec=pltpu.PrefetchScalarGridSpec(
                num_scalar_prefetch=0, grid=grid,
                in_specs=in_specs, out_specs=out_specs),
            compiler_params=pltpu.CompilerParams(
                dimension_semantics=("parallel",),
                vmem_limit_bytes=vmem_limit),
            cost_estimate=cost,
        )(xf, w1t, b1, wc, bc)

    try:
        out = _call(True)
    except Exception:
        # pipeline_mode=pl.Buffered(1) unsupported on this jax version: fall
        # back to default double-buffered weights (identical results).
        out = _call(False)

    if out_ncw:
        return out
    return jnp.transpose(out.reshape(B, T, d_model), (0, 2, 1))


# ---------------------------------------------------------------------------
# Pure-JAX reference & self-test
# ---------------------------------------------------------------------------
def _reference(x, w1_weight, w1_bias, conv_weight, conv_bias):
    """Reference of the module's forward (eval-mode dropout), NCW output."""
    h = jnp.maximum(jnp.einsum("btd,fd->btf", x, w1_weight) + w1_bias, 0.0)
    B, T, _ = x.shape
    d_model, _, width = conv_weight.shape
    pad = (width - 1) // 2
    hpad = jnp.pad(h, ((0, 0), (pad, width - 1 - pad), (0, 0)))
    out = jnp.zeros((B, T, d_model), jnp.float32) + conv_bias
    for k in range(width):
        out = out + jnp.einsum("btf,of->bto", hpad[:, k:k + T, :],
                               conv_weight[:, :, k])
    return jnp.transpose(out, (0, 2, 1))


if __name__ == "__main__":
    # Small, module-consistent configuration:
    #   d_model=128, d_ff=256, width=3 (odd -> 'same' padding), batch=2, seq=16
    B, T, d_model, d_ff, width = 2, 16, 128, 256, 3

    key = jax.random.PRNGKey(0)
    kx, kw1, kb1, kwc, kbc, kx2 = jax.random.split(key, 6)

    x = jax.random.normal(kx, (B, T, d_model), dtype=jnp.float32)
    w1_weight = jax.random.normal(kw1, (d_ff, d_model), dtype=jnp.float32) * 0.1
    w1_bias = jax.random.normal(kb1, (d_ff,), dtype=jnp.float32) * 0.1
    conv_weight = jax.random.normal(kwc, (d_model, d_ff, width),
                                    dtype=jnp.float32) * 0.1
    conv_bias = jax.random.normal(kbc, (d_model,), dtype=jnp.float32) * 0.1

    ref = _reference(x, w1_weight, w1_bias, conv_weight, conv_bias)

    # f32 MXU operands: tight check (small T -> lane-dense NTC store path).
    params_f32 = prepare_weights(w1_weight, w1_bias, conv_weight, conv_bias,
                                 matmul_dtype=jnp.float32)
    out_f32 = jax.block_until_ready(positionwise_conv_forward_mul(x, params_f32))
    assert out_f32.shape == (B, d_model, T)
    np.testing.assert_allclose(np.asarray(out_f32), np.asarray(ref),
                               rtol=5e-4, atol=5e-4)

    # bf16 MXU operands (default perf path on v6e/v7x), f32 accumulation.
    params_bf16 = prepare_weights(w1_weight, w1_bias, conv_weight, conv_bias,
                                  matmul_dtype=jnp.bfloat16)
    out_bf16 = jax.block_until_ready(positionwise_conv_forward_mul(x, params_bf16))
    np.testing.assert_allclose(np.asarray(out_bf16), np.asarray(ref),
                               rtol=2e-2, atol=1e-1)

    # Lane-friendly sequence (T % 128 == 0) exercises the in-kernel NCW store.
    T2 = 128
    x2 = jax.random.normal(kx2, (B, T2, d_model), dtype=jnp.float32)
    ref2 = _reference(x2, w1_weight, w1_bias, conv_weight, conv_bias)
    out2 = jax.block_until_ready(positionwise_conv_forward_mul(x2, params_f32))
    assert out2.shape == (B, d_model, T2)
    np.testing.assert_allclose(np.asarray(out2), np.asarray(ref2),
                               rtol=5e-4, atol=5e-4)

    print("KERNEL_OK")
</pallas_src>

<mosaic_0001>
module attributes {stable_mosaic.version = 11 : i64} {
  func.func @_ffn_conv_kernel(%arg0: i32, %arg1: memref<16x128xf32, #tpu.memory_space<vmem>>, %arg2: memref<128x256xf32, #tpu.memory_space<vmem>>, %arg3: memref<1x256xf32, #tpu.memory_space<vmem>>, %arg4: memref<3x256x128xf32, #tpu.memory_space<vmem>>, %arg5: memref<1x128xf32, #tpu.memory_space<vmem>>, %arg6: memref<16x128xf32, #tpu.memory_space<vmem>>) attributes {dimension_semantics = [#tpu.dimension_semantics<parallel>], iteration_bounds = array<i64: 2>, scalar_prefetch = 0 : i64, scratch_operands = 0 : i64, tpu.core_type = #tpu.core_type<tc>, window_params = [{transform_indices = @transform_0, window_bounds = array<i64: 16, 128>}, {pipeline_mode = #tpu.pipeline_mode<synchronous>, transform_indices = @transform_1, window_bounds = array<i64: 128, 256>}, {pipeline_mode = #tpu.pipeline_mode<synchronous>, transform_indices = @transform_2, window_bounds = array<i64: 1, 256>}, {pipeline_mode = #tpu.pipeline_mode<synchronous>, transform_indices = @transform_3, window_bounds = array<i64: 3, 256, 128>}, {pipeline_mode = #tpu.pipeline_mode<synchronous>, transform_indices = @transform_4, window_bounds = array<i64: 1, 128>}, {transform_indices = @transform_5, window_bounds = array<i64: 16, 128>}]} {
    %c0 = arith.constant 0 : index
    %c0_0 = arith.constant 0 : index
    %0 = vector.load %arg1[%c0, %c0_0] : memref<16x128xf32, #tpu.memory_space<vmem>>, vector<16x128xf32>
    %c0_1 = arith.constant 0 : index
    %c0_2 = arith.constant 0 : index
    %1 = vector.load %arg2[%c0_1, %c0_2] : memref<128x256xf32, #tpu.memory_space<vmem>>, vector<128x256xf32>
    %cst = arith.constant dense<0.000000e+00> : vector<16x256xf32>
    %2 = tpu.matmul %0, %1, %cst {dimension_numbers = #tpu.dot_dimension_numbers<[1], [0], [0], [1], [0, 0, 1, 1], [], []>} : vector<16x128xf32>, vector<128x256xf32>, vector<16x256xf32> -> vector<16x256xf32>
    %c0_3 = arith.constant 0 : index
    %c0_4 = arith.constant 0 : index
    %3 = vector.load %arg3[%c0_3, %c0_4] : memref<1x256xf32, #tpu.memory_space<vmem>>, vector<1x256xf32>
    %4 = vector.broadcast %3 : vector<1x256xf32> to vector<16x256xf32>
    %5 = arith.addf %2, %4 : vector<16x256xf32>
    %cst_5 = arith.constant 0.000000e+00 : f32
    %6 = vector.broadcast %cst_5 : f32 to vector<16x256xf32>
    %7 = arith.maximumf %5, %6 : vector<16x256xf32>
    %c1 = arith.constant 1 : index
    %c0_6 = arith.constant 0 : index
    %c0_7 = arith.constant 0 : index
    %8 = vector.load %arg4[%c1, %c0_6, %c0_7] : memref<3x256x128xf32, #tpu.memory_space<vmem>>, vector<1x256x128xf32>
    %9 = vector.shape_cast %8 : vector<1x256x128xf32> to vector<256x128xf32>
    %cst_8 = arith.constant dense<0.000000e+00> : vector<16x128xf32>
    %10 = tpu.matmul %7, %9, %cst_8 {dimension_numbers = #tpu.dot_dimension_numbers<[1], [0], [0], [1], [0, 0, 1, 1], [], []>} : vector<16x256xf32>, vector<256x128xf32>, vector<16x128xf32> -> vector<16x128xf32>
    %c0_9 = arith.constant 0 : index
    %c0_10 = arith.constant 0 : index
    %11 = vector.load %arg5[%c0_9, %c0_10] : memref<1x128xf32, #tpu.memory_space<vmem>>, vector<1x128xf32>
    %12 = vector.broadcast %11 : vector<1x128xf32> to vector<16x128xf32>
    %13 = arith.addf %10, %12 : vector<16x128xf32>
    %14 = tpu.iota {dimensions = array<i32: 0>} : vector<16x1xi32>
    %c1_i32 = arith.constant 1 : i32
    %15 = tpu.dynamic_rotate %7 by %c1_i32 dim 0 : vector<16x256xf32>, i32 -> vector<16x256xf32>
    %c-1_i32 = arith.constant -1 : i32
    %16 = vector.broadcast %c-1_i32 : i32 to vector<16x1xi32>
    %17 = arith.addi %14, %16 : vector<16x1xi32>
    %c0_i32 = arith.constant 0 : i32
    %18 = vector.broadcast %c0_i32 : i32 to vector<16x1xi32>
    %19 = arith.cmpi sge, %17, %18 : vector<16x1xi32>
    %c-1_i32_11 = arith.constant -1 : i32
    %20 = vector.broadcast %c-1_i32_11 : i32 to vector<16x1xi32>
    %21 = arith.addi %14, %20 : vector<16x1xi32>
    %c16_i32 = arith.constant 16 : i32
    %22 = vector.broadcast %c16_i32 : i32 to vector<16x1xi32>
    %23 = arith.cmpi slt, %21, %22 : vector<16x1xi32>
    %24 = arith.andi %19, %23 : vector<16x1xi1>
    %cst_12 = arith.constant 0.000000e+00 : f32
    %25 = vector.shape_cast %24 : vector<16x1xi1> to vector<16x1xi1>
    %26 = vector.broadcast %25 : vector<16x1xi1> to vector<16x256xi1>
    %27 = vector.broadcast %cst_12 : f32 to vector<16x256xf32>
    %28 = arith.select %26, %15, %27 : vector<16x256xi1>, vector<16x256xf32>
    %c0_13 = arith.constant 0 : index
    %c0_14 = arith.constant 0 : index
    %c0_15 = arith.constant 0 : index
    %29 = vector.load %arg4[%c0_13, %c0_14, %c0_15] : memref<3x256x128xf32, #tpu.memory_space<vmem>>, vector<1x256x128xf32>
    %30 = vector.shape_cast %29 : vector<1x256x128xf32> to vector<256x128xf32>
    %cst_16 = arith.constant dense<0.000000e+00> : vector<16x128xf32>
    %31 = tpu.matmul %28, %30, %cst_16 {dimension_numbers = #tpu.dot_dimension_numbers<[1], [0], [0], [1], [0, 0, 1, 1], [], []>} : vector<16x256xf32>, vector<256x128xf32>, vector<16x128xf32> -> vector<16x128xf32>
    %32 = arith.addf %13, %31 : vector<16x128xf32>
    %c15_i32 = arith.constant 15 : i32
    %33 = tpu.dynamic_rotate %7 by %c15_i32 dim 0 : vector<16x256xf32>, i32 -> vector<16x256xf32>
    %c1_i32_17 = arith.constant 1 : i32
    %34 = vector.broadcast %c1_i32_17 : i32 to vector<16x1xi32>
    %35 = arith.addi %14, %34 : vector<16x1xi32>
    %c0_i32_18 = arith.constant 0 : i32
    %36 = vector.broadcast %c0_i32_18 : i32 to vector<16x1xi32>
    %37 = arith.cmpi sge, %35, %36 : vector<16x1xi32>
    %c1_i32_19 = arith.constant 1 : i32
    %38 = vector.broadcast %c1_i32_19 : i32 to vector<16x1xi32>
    %39 = arith.addi %14, %38 : vector<16x1xi32>
    %c16_i32_20 = arith.constant 16 : i32
    %40 = vector.broadcast %c16_i32_20 : i32 to vector<16x1xi32>
    %41 = arith.cmpi slt, %39, %40 : vector<16x1xi32>
    %42 = arith.andi %37, %41 : vector<16x1xi1>
    %cst_21 = arith.constant 0.000000e+00 : f32
    %43 = vector.shape_cast %42 : vector<16x1xi1> to vector<16x1xi1>
    %44 = vector.broadcast %43 : vector<16x1xi1> to vector<16x256xi1>
    %45 = vector.broadcast %cst_21 : f32 to vector<16x256xf32>
    %46 = arith.select %44, %33, %45 : vector<16x256xi1>, vector<16x256xf32>
    %c2 = arith.constant 2 : index
    %c0_22 = arith.constant 0 : index
    %c0_23 = arith.constant 0 : index
    %47 = vector.load %arg4[%c2, %c0_22, %c0_23] : memref<3x256x128xf32, #tpu.memory_space<vmem>>, vector<1x256x128xf32>
    %48 = vector.shape_cast %47 : vector<1x256x128xf32> to vector<256x128xf32>
    %cst_24 = arith.constant dense<0.000000e+00> : vector<16x128xf32>
    %49 = tpu.matmul %46, %48, %cst_24 {dimension_numbers = #tpu.dot_dimension_numbers<[1], [0], [0], [1], [0, 0, 1, 1], [], []>} : vector<16x256xf32>, vector<256x128xf32>, vector<16x128xf32> -> vector<16x128xf32>
    %50 = arith.addf %32, %49 : vector<16x128xf32>
    %c0_25 = arith.constant 0 : index
    %c0_26 = arith.constant 0 : index
    %51 = vector.load %arg6[%c0_25, %c0_26] : memref<16x128xf32, #tpu.memory_space<vmem>>, vector<16x128xf32>
    tpu.vector_store %arg6[%c0_25, %c0_26], %50 {strides = array<i32>} : memref<16x128xf32, #tpu.memory_space<vmem>>, vector<16x128xf32>,
    return
  }
  func.func @transform_0(%arg0: i32) -> (i32, i32) {
    %c0_i32 = arith.constant 0 : i32
    %c0_i32_0 = arith.constant 0 : i32
    return %arg0, %c0_i32 : i32, i32
  }
  func.func @transform_1(%arg0: i32) -> (i32, i32) {
    %c0_i32 = arith.constant 0 : i32
    %c0_i32_0 = arith.constant 0 : i32
    %c0_i32_1 = arith.constant 0 : i32
    return %c0_i32, %c0_i32_0 : i32, i32
  }
  func.func @transform_2(%arg0: i32) -> (i32, i32) {
    %c0_i32 = arith.constant 0 : i32
    %c0_i32_0 = arith.constant 0 : i32
    %c0_i32_1 = arith.constant 0 : i32
    return %c0_i32, %c0_i32_0 : i32, i32
  }
  func.func @transform_3(%arg0: i32) -> (i32, i32, i32) {
    %c0_i32 = arith.constant 0 : i32
    %c0_i32_0 = arith.constant 0 : i32
    %c0_i32_1 = arith.constant 0 : i32
    %c0_i32_2 = arith.constant 0 : i32
    return %c0_i32, %c0_i32_0, %c0_i32_1 : i32, i32, i32
  }
  func.func @transform_4(%arg0: i32) -> (i32, i32) {
    %c0_i32 = arith.constant 0 : i32
    %c0_i32_0 = arith.constant 0 : i32
    %c0_i32_1 = arith.constant 0 : i32
    return %c0_i32, %c0_i32_0 : i32, i32
  }
  func.func @transform_5(%arg0: i32) -> (i32, i32) {
    %c0_i32 = arith.constant 0 : i32
    %c0_i32_0 = arith.constant 0 : i32
    return %arg0, %c0_i32 : i32, i32
  }
}

module attributes {stable_mosaic.version = 11 : i64} {
  func.func @_ffn_conv_kernel(%arg0: i32, %arg1: memref<16x128xf32, #tpu.memory_space<vmem>>, %arg2: memref<128x256xf32, #tpu.memory_space<vmem>>, %arg3: memref<1x256xf32, #tpu.memory_space<vmem>>, %arg4: memref<3x256x128xf32, #tpu.memory_space<vmem>>, %arg5: memref<1x128xf32, #tpu.memory_space<vmem>>, %arg6: memref<16x128xf32, #tpu.memory_space<vmem>>) attributes {dimension_semantics = [#tpu.dimension_semantics<parallel>], iteration_bounds = array<i64: 2>, scalar_prefetch = 0 : i64, scratch_operands = 0 : i64, tpu.core_type = #tpu.core_type<tc>, window_params = [{transform_indices = @transform_0, window_bounds = array<i64: 16, 128>}, {pipeline_mode = #tpu.pipeline_mode<synchronous>, transform_indices = @transform_1, window_bounds = array<i64: 128, 256>}, {pipeline_mode = #tpu.pipeline_mode<synchronous>, transform_indices = @transform_2, window_bounds = array<i64: 1, 256>}, {pipeline_mode = #tpu.pipeline_mode<synchronous>, transform_indices = @transform_3, window_bounds = array<i64: 3, 256, 128>}, {pipeline_mode = #tpu.pipeline_mode<synchronous>, transform_indices = @transform_4, window_bounds = array<i64: 1, 128>}, {transform_indices = @transform_5, window_bounds = array<i64: 16, 128>}]} {
    %c0 = arith.constant 0 : index
    %c0_0 = arith.constant 0 : index
    %0 = vector.load %arg1[%c0, %c0_0] : memref<16x128xf32, #tpu.memory_space<vmem>>, vector<16x128xf32>
    %c0_1 = arith.constant 0 : index
    %c0_2 = arith.constant 0 : index
    %1 = vector.load %arg2[%c0_1, %c0_2] : memref<128x256xf32, #tpu.memory_space<vmem>>, vector<128x256xf32>
    %cst = arith.constant dense<0.000000e+00> : vector<16x256xf32>
    %2 = tpu.matmul %0, %1, %cst {dimension_numbers = #tpu.dot_dimension_numbers<[1], [0], [0], [1], [0, 0, 1, 1], [], []>} : vector<16x128xf32>, vector<128x256xf32>, vector<16x256xf32> -> vector<16x256xf32>
    %c0_3 = arith.constant 0 : index
    %c0_4 = arith.constant 0 : index
    %3 = vector.load %arg3[%c0_3, %c0_4] : memref<1x256xf32, #tpu.memory_space<vmem>>, vector<1x256xf32>
    %4 = vector.broadcast %3 : vector<1x256xf32> to vector<16x256xf32>
    %5 = arith.addf %2, %4 : vector<16x256xf32>
    %cst_5 = arith.constant 0.000000e+00 : f32
    %6 = vector.broadcast %cst_5 : f32 to vector<16x256xf32>
    %7 = arith.maximumf %5, %6 : vector<16x256xf32>
    %c1 = arith.constant 1 : index
    %c0_6 = arith.constant 0 : index
    %c0_7 = arith.constant 0 : index
    %8 = vector.load %arg4[%c1, %c0_6, %c0_7] : memref<3x256x128xf32, #tpu.memory_space<vmem>>, vector<1x256x128xf32>
    %9 = vector.shape_cast %8 : vector<1x256x128xf32> to vector<256x128xf32>
    %cst_8 = arith.constant dense<0.000000e+00> : vector<16x128xf32>
    %10 = tpu.matmul %7, %9, %cst_8 {dimension_numbers = #tpu.dot_dimension_numbers<[1], [0], [0], [1], [0, 0, 1, 1], [], []>} : vector<16x256xf32>, vector<256x128xf32>, vector<16x128xf32> -> vector<16x128xf32>
    %c0_9 = arith.constant 0 : index
    %c0_10 = arith.constant 0 : index
    %11 = vector.load %arg5[%c0_9, %c0_10] : memref<1x128xf32, #tpu.memory_space<vmem>>, vector<1x128xf32>
    %12 = vector.broadcast %11 : vector<1x128xf32> to vector<16x128xf32>
    %13 = arith.addf %10, %12 : vector<16x128xf32>
    %14 = tpu.iota {dimensions = array<i32: 0>} : vector<16x1xi32>
    %c1_i32 = arith.constant 1 : i32
    %15 = tpu.dynamic_rotate %7 by %c1_i32 dim 0 : vector<16x256xf32>, i32 -> vector<16x256xf32>
    %c-1_i32 = arith.constant -1 : i32
    %16 = vector.broadcast %c-1_i32 : i32 to vector<16x1xi32>
    %17 = arith.addi %14, %16 : vector<16x1xi32>
    %c0_i32 = arith.constant 0 : i32
    %18 = vector.broadcast %c0_i32 : i32 to vector<16x1xi32>
    %19 = arith.cmpi sge, %17, %18 : vector<16x1xi32>
    %c-1_i32_11 = arith.constant -1 : i32
    %20 = vector.broadcast %c-1_i32_11 : i32 to vector<16x1xi32>
    %21 = arith.addi %14, %20 : vector<16x1xi32>
    %c16_i32 = arith.constant 16 : i32
    %22 = vector.broadcast %c16_i32 : i32 to vector<16x1xi32>
    %23 = arith.cmpi slt, %21, %22 : vector<16x1xi32>
    %24 = arith.andi %19, %23 : vector<16x1xi1>
    %cst_12 = arith.constant 0.000000e+00 : f32
    %25 = vector.shape_cast %24 : vector<16x1xi1> to vector<16x1xi1>
    %26 = vector.broadcast %25 : vector<16x1xi1> to vector<16x256xi1>
    %27 = vector.broadcast %cst_12 : f32 to vector<16x256xf32>
    %28 = arith.select %26, %15, %27 : vector<16x256xi1>, vector<16x256xf32>
    %c0_13 = arith.constant 0 : index
    %c0_14 = arith.constant 0 : index
    %c0_15 = arith.constant 0 : index
    %29 = vector.load %arg4[%c0_13, %c0_14, %c0_15] : memref<3x256x128xf32, #tpu.memory_space<vmem>>, vector<1x256x128xf32>
    %30 = vector.shape_cast %29 : vector<1x256x128xf32> to vector<256x128xf32>
    %cst_16 = arith.constant dense<0.000000e+00> : vector<16x128xf32>
    %31 = tpu.matmul %28, %30, %cst_16 {dimension_numbers = #tpu.dot_dimension_numbers<[1], [0], [0], [1], [0, 0, 1, 1], [], []>} : vector<16x256xf32>, vector<256x128xf32>, vector<16x128xf32> -> vector<16x128xf32>
    %32 = arith.addf %13, %31 : vector<16x128xf32>
    %c15_i32 = arith.constant 15 : i32
    %33 = tpu.dynamic_rotate %7 by %c15_i32 dim 0 : vector<16x256xf32>, i32 -> vector<16x256xf32>
    %c1_i32_17 = arith.constant 1 : i32
    %34 = vector.broadcast %c1_i32_17 : i32 to vector<16x1xi32>
    %35 = arith.addi %14, %34 : vector<16x1xi32>
    %c0_i32_18 = arith.constant 0 : i32
    %36 = vector.broadcast %c0_i32_18 : i32 to vector<16x1xi32>
    %37 = arith.cmpi sge, %35, %36 : vector<16x1xi32>
    %c1_i32_19 = arith.constant 1 : i32
    %38 = vector.broadcast %c1_i32_19 : i32 to vector<16x1xi32>
    %39 = arith.addi %14, %38 : vector<16x1xi32>
    %c16_i32_20 = arith.constant 16 : i32
    %40 = vector.broadcast %c16_i32_20 : i32 to vector<16x1xi32>
    %41 = arith.cmpi slt, %39, %40 : vector<16x1xi32>
    %42 = arith.andi %37, %41 : vector<16x1xi1>
    %cst_21 = arith.constant 0.000000e+00 : f32
    %43 = vector.shape_cast %42 : vector<16x1xi1> to vector<16x1xi1>
    %44 = vector.broadcast %43 : vector<16x1xi1> to vector<16x256xi1>
    %45 = vector.broadcast %cst_21 : f32 to vector<16x256xf32>
    %46 = arith.select %44, %33, %45 : vector<16x256xi1>, vector<16x256xf32>
    %c2 = arith.constant 2 : index
    %c0_22 = arith.constant 0 : index
    %c0_23 = arith.constant 0 : index
    %47 = vector.load %arg4[%c2, %c0_22, %c0_23] : memref<3x256x128xf32, #tpu.memory_space<vmem>>, vector<1x256x128xf32>
    %48 = vector.shape_cast %47 : vector<1x256x128xf32> to vector<256x128xf32>
    %cst_24 = arith.constant dense<0.000000e+00> : vector<16x128xf32>
    %49 = tpu.matmul %46, %48, %cst_24 {dimension_numbers = #tpu.dot_dimension_numbers<[1], [0], [0], [1], [0, 0, 1, 1], [], []>} : vector<16x256xf32>, vector<256x128xf32>, vector<16x128xf32> -> vector<16x128xf32>
    %50 = arith.addf %32, %49 : vector<16x128xf32>
    %c0_25 = arith.constant 0 : index
    %c0_26 = arith.constant 0 : index
    %51 = vector.load %arg6[%c0_25, %c0_26] : memref<16x128xf32, #tpu.memory_space<vmem>>, vector<16x128xf32>
    tpu.vector_store %arg6[%c0_25, %c0_26], %50 {strides = array<i32>} : memref<16x128xf32, #tpu.memory_space<vmem>>, vector<16x128xf32>,
    return
  }
  func.func @transform_0(%arg0: i32) -> (i32, i32) {
    %c0_i32 = arith.constant 0 : i32
    %c0_i32_0 = arith.constant 0 : i32
    return %arg0, %c0_i32 : i32, i32
  }
  func.func @transform_1(%arg0: i32) -> (i32, i32) {
    %c0_i32 = arith.constant 0 : i32
    %c0_i32_0 = arith.constant 0 : i32
    %c0_i32_1 = arith.constant 0 : i32
    return %c0_i32, %c0_i32_0 : i32, i32
  }
  func.func @transform_2(%arg0: i32) -> (i32, i32) {
    %c0_i32 = arith.constant 0 : i32
    %c0_i32_0 = arith.constant 0 : i32
    %c0_i32_1 = arith.constant 0 : i32
    return %c0_i32, %c0_i32_0 : i32, i32
  }
  func.func @transform_3(%arg0: i32) -> (i32, i32, i32) {
    %c0_i32 = arith.constant 0 : i32
    %c0_i32_0 = arith.constant 0 : i32
    %c0_i32_1 = arith.constant 0 : i32
    %c0_i32_2 = arith.constant 0 : i32
    return %c0_i32, %c0_i32_0, %c0_i32_1 : i32, i32, i32
  }
  func.func @transform_4(%arg0: i32) -> (i32, i32) {
    %c0_i32 = arith.constant 0 : i32
    %c0_i32_0 = arith.constant 0 : i32
    %c0_i32_1 = arith.constant 0 : i32
    return %c0_i32, %c0_i32_0 : i32, i32
  }
  func.func @transform_5(%arg0: i32) -> (i32, i32) {
    %c0_i32 = arith.constant 0 : i32
    %c0_i32_0 = arith.constant 0 : i32
    return %arg0, %c0_i32 : i32, i32
  }
}

</mosaic_0001>

<llo_original>
// kernel: tpu_custom_call.1
$region0: #{tpu_custom_call.1}
  #allocation0 [shape = 'u32[]', space=smem, size = 0x4, offset = 0x4, fixed_abs, tag = 'smem constant byte address 0x4 - core index']
  #allocation1 [shape = 'u32[144,128]{1,0:T(1,128)}', space=vmem, size = 0x12000, scoped, tag = 'internal scratch']
  %s0 = inlined_call_operand.hbm [shape: f32[32,128], index: 0, kind: input, shape index: {}]
  %s1 = inlined_call_operand.hbm [shape: f32[128,256], index: 1, kind: input, shape index: {}]
  %s2 = inlined_call_operand.vmem [shape: f32[1,256], index: 2, kind: input, shape index: {}]
  %s3 = inlined_call_operand.hbm [shape: f32[3,256,128], index: 3, kind: input, shape index: {}]
  %s4 = inlined_call_operand.vmem [shape: f32[1,128], index: 4, kind: input, shape index: {}]
  %s5 = inlined_call_operand.hbm [shape: f32[32,128], index: 5, kind: output, shape index: {}]
  %s6 = sld [smem:[#allocation0]]
  $region65: #{tpu_custom_call.1} parent=0
    _
  %s8 = ssub.s32 1, %s6
  %s9 = scalar_select 0, %s8, %s6
  $region1: #{tpu_custom_call.1} parent=0
    #allocation2 [shape = 'u8[16384]{0}', space=vmem, size = 0x4000, scoped, tag = 'input window, operand 0']
    #allocation3 [shape = 's32[2]{0}', space=sflag, size = 0x8, scoped, tag = 'scoped memory for tpu_custom_call.1']
    #allocation4 [shape = 's32[2]{0}', space=sflag, size = 0x8, scoped, tag = 'scoped memory for tpu_custom_call.1']
    #allocation5 [shape = 'u8[131072]{0}', space=vmem, size = 0x20000, scoped, tag = 'input window, operand 1, single buffered']
    #allocation6 [shape = 's32[1]{0}', space=sflag, size = 0x4, scoped, tag = 'scoped memory for tpu_custom_call.1']
    #allocation7 [shape = 'u8[393216]{0}', space=vmem, size = 0x60000, scoped, tag = 'input window, operand 3, single buffered']
    #allocation8 [shape = 'u8[16384]{0}', space=vmem, size = 0x4000, scoped, tag = 'output window, operand 0']
    %10 = vsyncpa [#allocation3], 0
    %s11 = scalar_lea.sflag [#allocation3], 1
    %12 = vsyncpa %s11, 0
    %13 = vsyncpa [#allocation6], 0
    %14 = vsyncpa [#allocation4], 0
    %s15 = scalar_lea.sflag [#allocation4], 1
    %16 = vsyncpa %s15, 0
    loop: start=0, step=1, limit=4
    $region2: #{tpu_custom_call.1} parent=1 // loop_pre_header
      _
    $region3: #{tpu_custom_call.1} parent=1 // loop_header
      %s18 = sphi 0, %s22
      %p19 = scmp.ge.s32.totalorder %s18, 4
      %s28 = sphi 0, %s30
      %s31 = sphi 0, %s28
      %s32 = sphi 0, %s31
      %s48 = sphi 0, %s32
      %s52 = sphi 0, %s52
      %s54 = sphi 0, %s52
      %s55 = sphi 0, %s54
      %s69 = sphi 0, %s55
      %s73 = sphi 0, %s73
      %s75 = sphi 0, %s73
      %s76 = sphi 0, %s75
      %s90 = sphi 0, %s76
      %s94 = sphi 0, %s94
      %s96 = sphi 0, %s94
      %s97 = sphi 0, %s96
      %s111 = sphi 0, %s97
      %s115 = sphi 0, %s115
      %s117 = sphi 0, %s115
      %s118 = sphi 0, %s117
      %s132 = sphi 0, %s118
      %s138 = sphi 0, %s140
      %s141 = sphi 0, %s138
      %s142 = sphi 0, %s141
      %s158 = sphi 0, %s142
    $region4: #{tpu_custom_call.1} parent=1 // loop_header_branch
      %21 = sbr.rel (%p19) target = $region8
    $region5: #{tpu_custom_call.1} parent=1 // loop_body
      %s23 = ssub.s32 %s18, 1
      %s24 = ssub.s32 %s18, 2
      %s25 = sadd.s32 %s18, 1
      %s26 = ssub.s32 %s18, %s25
      %p27 = scmp.eq.s32.totalorder %s26, 0
      %s29 = sadd.s32 %s28, 1
      %s30 = scalar_select %p27, %s28, %s29
      %p33 = pneg %p27
      %p34 = scmp.eq.s32.totalorder %s18, 1
      %p35 = por %p33, %p34
      %p36 = scmp.ne.s32.totalorder %s28, %s31
      %p37 = scmp.eq.s32.totalorder %s18, 0
      %p38 = por %p36, %p37
      %p39 = scmp.ne.s32.totalorder %s28, %s31
      %p40 = scmp.eq.s32.totalorder %s23, 1
      %p41 = por %p39, %p40
      %p42 = scmp.ne.s32.totalorder %s31, %s32
      %p43 = scmp.eq.s32.totalorder %s23, 0
      %p44 = por %p42, %p43
      %p45 = scmp.ne.s32.totalorder %s31, %s32
      %p46 = scmp.eq.s32.totalorder %s24, 1
      %p47 = por %p45, %p46
      %p49 = scmp.ne.s32.totalorder %s32, %s48
      %p50 = scmp.eq.s32.totalorder %s24, 0
      %p51 = por %p49, %p50
      %s53 = sadd.s32 %s52, 1
      %p56 = scmp.eq.s32.totalorder %s18, 1
      %p57 = scmp.ne.s32.totalorder %s52, %s54
      %p58 = scmp.eq.s32.totalorder %s18, 0
      %p59 = por %p57, %p58
      %p60 = scmp.ne.s32.totalorder %s52, %s54
      %p61 = scmp.eq.s32.totalorder %s23, 1
      %p62 = por %p60, %p61
      %p63 = scmp.ne.s32.totalorder %s54, %s55
      %p64 = scmp.eq.s32.totalorder %s23, 0
      %p65 = por %p63, %p64
      %p66 = scmp.ne.s32.totalorder %s54, %s55
      %p67 = scmp.eq.s32.totalorder %s24, 1
      %p68 = por %p66, %p67
      %p70 = scmp.ne.s32.totalorder %s55, %s69
      %p71 = scmp.eq.s32.totalorder %s24, 0
      %p72 = por %p70, %p71
      %s74 = sadd.s32 %s73, 1
      %p77 = scmp.eq.s32.totalorder %s18, 1
      %p78 = scmp.ne.s32.totalorder %s73, %s75
      %p79 = scmp.eq.s32.totalorder %s18, 0
      %p80 = por %p78, %p79
      %p81 = scmp.ne.s32.totalorder %s73, %s75
      %p82 = scmp.eq.s32.totalorder %s23, 1
      %p83 = por %p81, %p82
      %p84 = scmp.ne.s32.totalorder %s75, %s76
      %p85 = scmp.eq.s32.totalorder %s23, 0
      %p86 = por %p84, %p85
      %p87 = scmp.ne.s32.totalorder %s75, %s76
      %p88 = scmp.eq.s32.totalorder %s24, 1
      %p89 = por %p87, %p88
      %p91 = scmp.ne.s32.totalorder %s76, %s90
      %p92 = scmp.eq.s32.totalorder %s24, 0
      %p93 = por %p91, %p92
      %s95 = sadd.s32 %s94, 1
      %p98 = scmp.eq.s32.totalorder %s18, 1
      %p99 = scmp.ne.s32.totalorder %s94, %s96
      %p100 = scmp.eq.s32.totalorder %s18, 0
      %p101 = por %p99, %p100
      %p102 = scmp.ne.s32.totalorder %s94, %s96
      %p103 = scmp.eq.s32.totalorder %s23, 1
      %p104 = por %p102, %p103
      %p105 = scmp.ne.s32.totalorder %s96, %s97
      %p106 = scmp.eq.s32.totalorder %s23, 0
      %p107 = por %p105, %p106
      %p108 = scmp.ne.s32.totalorder %s96, %s97
      %p109 = scmp.eq.s32.totalorder %s24, 1
      %p110 = por %p108, %p109
      %p112 = scmp.ne.s32.totalorder %s97, %s111
      %p113 = scmp.eq.s32.totalorder %s24, 0
      %p114 = por %p112, %p113
      %s116 = sadd.s32 %s115, 1
      %p119 = scmp.eq.s32.totalorder %s18, 1
      %p120 = scmp.ne.s32.totalorder %s115, %s117
      %p121 = scmp.eq.s32.totalorder %s18, 0
      %p122 = por %p120, %p121
      %p123 = scmp.ne.s32.totalorder %s115, %s117
      %p124 = scmp.eq.s32.totalorder %s23, 1
      %p125 = por %p123, %p124
      %p126 = scmp.ne.s32.totalorder %s117, %s118
      %p127 = scmp.eq.s32.totalorder %s23, 0
      %p128 = por %p126, %p127
      %p129 = scmp.ne.s32.totalorder %s117, %s118
      %p130 = scmp.eq.s32.totalorder %s24, 1
      %p131 = por %p129, %p130
      %p133 = scmp.ne.s32.totalorder %s118, %s132
      %p134 = scmp.eq.s32.totalorder %s24, 0
      %p135 = por %p133, %p134
      %s136 = ssub.s32 %s18, %s25
      %p137 = scmp.eq.s32.totalorder %s136, 0
      %s139 = sadd.s32 %s138, 1
      %s140 = scalar_select %p137, %s138, %s139
      %p143 = pneg %p137
      %p144 = scmp.eq.s32.totalorder %s18, 1
      %p145 = por %p143, %p144
      %p146 = scmp.ne.s32.totalorder %s138, %s141
      %p147 = scmp.eq.s32.totalorder %s18, 0
      %p148 = por %p146, %p147
      %p149 = scmp.ne.s32.totalorder %s138, %s141
      %p150 = scmp.eq.s32.totalorder %s23, 1
      %p151 = por %p149, %p150
      %p152 = scmp.ne.s32.totalorder %s141, %s142
      %p153 = scmp.eq.s32.totalorder %s23, 0
      %p154 = por %p152, %p153
      %p155 = scmp.ne.s32.totalorder %s141, %s142
      %p156 = scmp.eq.s32.totalorder %s24, 1
      %p157 = por %p155, %p156
      %p159 = scmp.ne.s32.totalorder %s142, %s158
      %p160 = scmp.eq.s32.totalorder %s24, 0
      %p161 = por %p159, %p160
      %p162 = scmp.le.s32.totalorder 1, %s18
      %p163 = scmp.lt.s32.totalorder %s18, 3
      %p164 = pnand %p162, %p163
      %p165 = pneg %p164
      // Predicated region
      $region9: #{tpu_custom_call.1} parent=5 // pred_check
        _
      $region10: #{tpu_custom_call.1} parent=5 // pred_check_branch
        %167 = sbr.rel (%p164) target = $region12
      $region11: #{tpu_custom_call.1} parent=5 // pred_region
        %s168 = ssub.s32 %s18, 1
        // Predicated region
        $region13: #{tpu_custom_call.1} parent=11 // pred_check
          %p169 = pneg %p65
        $region14: #{tpu_custom_call.1} parent=11 // pred_check_branch
          %171 = sbr.rel (%p169) target = $region16
        $region15: #{tpu_custom_call.1} parent=11 // pred_region
          %s173 = ssub.s32 4096, 4096
          %174 = vsyncadd [#allocation6], %s173
          %s175 = sshll.u32 [#allocation5], 4
          %s176 = int_to_ptr.vmem [resolvable:$true] %s175
          %181 = dma.hbm_to_vmem [thread:$0]  %s1, 4096, %s176, [#allocation6], 256, 256, 16
        $region16: #{tpu_custom_call.1} parent=11 // pred_fallthru
          _
        // Predicated region
        $region17: #{tpu_custom_call.1} parent=11 // pred_check
          %p182 = pneg %p86
        $region18: #{tpu_custom_call.1} parent=11 // pred_check_branch
          %184 = sbr.rel (%p182) target = $region20
        $region19: #{tpu_custom_call.1} parent=11 // pred_region
          _
        $region20: #{tpu_custom_call.1} parent=11 // pred_fallthru
          _
        // Predicated region
        $region21: #{tpu_custom_call.1} parent=11 // pred_check
          %p185 = pneg %p107
        $region22: #{tpu_custom_call.1} parent=11 // pred_check_branch
          %187 = sbr.rel (%p185) target = $region24
        $region23: #{tpu_custom_call.1} parent=11 // pred_region
          %s189 = ssub.s32 12288, 12288
          %190 = vsyncadd [#allocation6], %s189
          %s191 = sshll.u32 [#allocation7], 4
          %s192 = int_to_ptr.vmem [resolvable:$true] %s191
          %197 = dma.hbm_to_vmem [thread:$0]  %s3, 12288, %s192, [#allocation6], 128, 128, 8
        $region24: #{tpu_custom_call.1} parent=11 // pred_fallthru
          _
        // Predicated region
        $region25: #{tpu_custom_call.1} parent=11 // pred_check
          %p198 = pneg %p128
        $region26: #{tpu_custom_call.1} parent=11 // pred_check_branch
          %200 = sbr.rel (%p198) target = $region28
        $region27: #{tpu_custom_call.1} parent=11 // pred_region
          _
        $region28: #{tpu_custom_call.1} parent=11 // pred_fallthru
          _
      $region12: #{tpu_custom_call.1} parent=5 // pred_fallthru
        _
      %p201 = scmp.lt.s32.totalorder %s18, 2
      // Predicated region
      $region29: #{tpu_custom_call.1} parent=5 // pred_check
        %p202 = pneg %p201
      $region30: #{tpu_custom_call.1} parent=5 // pred_check_branch
        %204 = sbr.rel (%p202) target = $region32
      $region31: #{tpu_custom_call.1} parent=5 // pred_region
        // Predicated region
        $region33: #{tpu_custom_call.1} parent=31 // pred_check
          %p205 = pneg %p38
        $region34: #{tpu_custom_call.1} parent=31 // pred_check_branch
          %207 = sbr.rel (%p205) target = $region36
        $region35: #{tpu_custom_call.1} parent=31 // pred_region
          %s208 = sand.u32 %s28, 1
          %s209 = scalar_lea.sflag [#allocation3], %s208
          %s210 = sand.u32 %s28, 1
          %s211 = smul.addr %s210, 16
          %s212 = scalar_lea.vmem [#allocation2], %s211
          %s213 = smul.u32 2, %s18
          %s215 = ssub.s32 256, 256
          %216 = vsyncadd %s209, %s215
          %s217 = smul.addr %s213, 128
          %s218 = scalar_lea.hbm %s0, %s217
          %s219 = sshll.u32 %s212, 4
          %s220 = int_to_ptr.vmem [resolvable:$true] %s219
          %225 = dma.hbm_to_vmem [thread:$0]  %s218, 256, %s220, %s209, 128, 128, 8
        $region36: #{tpu_custom_call.1} parent=31 // pred_fallthru
          _
      $region32: #{tpu_custom_call.1} parent=5 // pred_fallthru
        _
      %p226 = scmp.le.s32.totalorder 1, %s18
      %p227 = scmp.lt.s32.totalorder %s18, 3
      %p228 = pnand %p226, %p227
      %p229 = pneg %p228
      // Predicated region
      $region37: #{tpu_custom_call.1} parent=5 // pred_check
        _
      $region38: #{tpu_custom_call.1} parent=5 // pred_check_branch
        %231 = sbr.rel (%p228) target = $region40
      $region39: #{tpu_custom_call.1} parent=5 // pred_region
        %s232 = ssub.s32 %s18, 1
        %s233 = sand.u32 %s31, 1
        %s234 = scalar_lea.sflag [#allocation3], %s233
        %s235 = sand.u32 %s31, 1
        %s236 = smul.addr %s235, 16
        %s237 = scalar_lea.vmem [#allocation2], %s236
        // Predicated region
        $region41: #{tpu_custom_call.1} parent=39 // pred_check
          %p238 = pneg %p44
        $region42: #{tpu_custom_call.1} parent=39 // pred_check_branch
          %240 = sbr.rel (%p238) target = $region44
        $region43: #{tpu_custom_call.1} parent=39 // pred_region
          %241 = dma.done %s234, 256
        $region44: #{tpu_custom_call.1} parent=39 // pred_fallthru
          _
        // Predicated region
        $region45: #{tpu_custom_call.1} parent=39 // pred_check
          %p242 = pneg %p65
        $region46: #{tpu_custom_call.1} parent=39 // pred_check_branch
          %244 = sbr.rel (%p242) target = $region48
        $region47: #{tpu_custom_call.1} parent=39 // pred_region
          %245 = dma.done [#allocation6], 4096
        $region48: #{tpu_custom_call.1} parent=39 // pred_fallthru
          _
        // Predicated region
        $region49: #{tpu_custom_call.1} parent=39 // pred_check
          %p246 = pneg %p107
        $region50: #{tpu_custom_call.1} parent=39 // pred_check_branch
          %248 = sbr.rel (%p246) target = $region52
        $region51: #{tpu_custom_call.1} parent=39 // pred_region
          %249 = dma.done [#allocation6], 12288
        $region52: #{tpu_custom_call.1} parent=39 // pred_fallthru
          _
        %s250 = sand.u32 %s31, 1
        %s251 = scalar_lea.sflag [#allocation3], %s250
        %s252 = sand.u32 %s31, 1
        %s253 = smul.addr %s252, 16
        %s254 = scalar_lea.vmem [#allocation2], %s253
        %p255 = pneg %p44
        %p256 = pneg %p41
        %p257 = pneg %p65
        %p258 = pneg %p62
        %p259 = pneg %p86
        %p260 = pneg %p83
        %p261 = pneg %p107
        %p262 = pneg %p104
        %p263 = pneg %p128
        %p264 = pneg %p125
        %p265 = pneg %p154
        %p266 = pneg %p151
        %s267 = sand.u32 %s141, 1
        %s268 = scalar_lea.sflag [#allocation4], %s267
        %s269 = sand.u32 %s141, 1
        %s270 = smul.addr %s269, 16
        %s271 = scalar_lea.vmem [#allocation8], %s270
        %s272 = smul.u32 2, %s23
        %s273 = smul.u32 2, %s23
        %v274 = vld [vmem:[%s237] sm:$0xff]
        %v275 = vld [vmem:[%s237 + $0x8] sm:$0xff]
        %v276 = vld [vmem:[#allocation5] sm:$0xff]
        %v277 = vld [vmem:[#allocation5 + $0x8] sm:$0xff]
        %v278 = vld [vmem:[#allocation5 + $0x10] sm:$0xff]
        %v279 = vld [vmem:[#allocation5 + $0x18] sm:$0xff]
        %v280 = vld [vmem:[#allocation5 + $0x20] sm:$0xff]
        %v281 = vld [vmem:[#allocation5 + $0x28] sm:$0xff]
        %v282 = vld [vmem:[#allocation5 + $0x30] sm:$0xff]
        %v283 = vld [vmem:[#allocation5 + $0x38] sm:$0xff]
        %v284 = vld [vmem:[#allocation5 + $0x40] sm:$0xff]
        %v285 = vld [vmem:[#allocation5 + $0x48] sm:$0xff]
        %v286 = vld [vmem:[#allocation5 + $0x50] sm:$0xff]
        %v287 = vld [vmem:[#allocation5 + $0x58] sm:$0xff]
        %v288 = vld [vmem:[#allocation5 + $0x60] sm:$0xff]
        %v289 = vld [vmem:[#allocation5 + $0x68] sm:$0xff]
        %v290 = vld [vmem:[#allocation5 + $0x70] sm:$0xff]
        %v291 = vld [vmem:[#allocation5 + $0x78] sm:$0xff]
        %v292 = vld [vmem:[#allocation5 + $0x80] sm:$0xff]
        %v293 = vld [vmem:[#allocation5 + $0x88] sm:$0xff]
        %v294 = vld [vmem:[#allocation5 + $0x90] sm:$0xff]
        %v295 = vld [vmem:[#allocation5 + $0x98] sm:$0xff]
        %v296 = vld [vmem:[#allocation5 + $0xa0] sm:$0xff]
        %v297 = vld [vmem:[#allocation5 + $0xa8] sm:$0xff]
        %v298 = vld [vmem:[#allocation5 + $0xb0] sm:$0xff]
        %v299 = vld [vmem:[#allocation5 + $0xb8] sm:$0xff]
        %v300 = vld [vmem:[#allocation5 + $0xc0] sm:$0xff]
        %v301 = vld [vmem:[#allocation5 + $0xc8] sm:$0xff]
        %v302 = vld [vmem:[#allocation5 + $0xd0] sm:$0xff]
        %v303 = vld [vmem:[#allocation5 + $0xd8] sm:$0xff]
        %v304 = vld [vmem:[#allocation5 + $0xe0] sm:$0xff]
        %v305 = vld [vmem:[#allocation5 + $0xe8] sm:$0xff]
        %v306 = vld [vmem:[#allocation5 + $0xf0] sm:$0xff]
        %v307 = vld [vmem:[#allocation5 + $0xf8] sm:$0xff]
        %v308 = vld [vmem:[%s2] sm:$0x3]
        %v310 = vlaneseq
        %v311 = vshrl.u32 %v310, 7
        %v312 = vsub.s32 0, %v311
        %v313 = vrot.slane %v308, %v312
        %v314 = vlaneseq
        %v315 = vshrl.u32 %v314, 7
        %v316 = vsub.s32 1, %v315
        %v317 = vrot.slane %v308, %v316
        %320 = vmatprep.subr.mxu0 %v307
        %321 = vmatpush1.msra.mxu0 %v306
        %322 = vmatprep.subr.mxu0 %v305
        %323 = vmatpush1.msra.mxu0 %v304
        %324 = vmatprep.subr.mxu0 %v303
        %325 = vmatpush1.msra.mxu0 %v302
        %326 = vmatprep.subr.mxu0 %v301
        %327 = vmatpush1.msra.mxu0 %v300
        %328 = vmatprep.subr.mxu0 %v299
        %329 = vmatpush1.msra.mxu0 %v298
        %330 = vmatprep.subr.mxu0 %v297
        %331 = vmatpush1.msra.mxu0 %v296
        %332 = vmatprep.subr.mxu0 %v295
        %333 = vmatpush1.msra.mxu0 %v294
        %334 = vmatprep.subr.mxu0 %v293
        %335 = vmatpush1.msra.mxu0 %v292
        %336 = vmatprep.subr.mxu0 %v291
        %337 = vmatpush1.msra.mxu0 %v290
        %338 = vmatprep.subr.mxu0 %v289
        %339 = vmatpush1.msra.mxu0 %v288
        %340 = vmatprep.subr.mxu0 %v287
        %341 = vmatpush1.msra.mxu0 %v286
        %342 = vmatprep.subr.mxu0 %v285
        %343 = vmatpush1.msra.mxu0 %v284
        %344 = vmatprep.subr.mxu0 %v283
        %345 = vmatpush1.msra.mxu0 %v282
        %346 = vmatprep.subr.mxu0 %v281
        %347 = vmatpush1.msra.mxu0 %v280
        %348 = vmatprep.subr.mxu0 %v279
        %349 = vmatpush1.msra.mxu0 %v278
        %350 = vmatprep.subr.mxu0 %v277
        %351 = vmatpush1.msra.mxu0 %v276
        %352 = vmatprep.subr.mxu0 0.0
        %353 = vmatpush2.msra.mxu0 0.0
        %354 = vmatprep.subr.mxu0 0.0
        %355 = vmatpush2.msra.mxu0 0.0
        %356 = vmatprep.subr.mxu0 0.0
        %357 = vmatpush2.msra.mxu0 0.0
        %358 = vmatprep.subr.mxu0 0.0
        %359 = vmatpush2.msra.mxu0 0.0
        %360 = vmatprep.subr.mxu0 0.0
        %361 = vmatpush2.msra.mxu0 0.0
        %362 = vmatprep.subr.mxu0 0.0
        %363 = vmatpush2.msra.mxu0 0.0
        %364 = vmatprep.subr.mxu0 0.0
        %365 = vmatpush2.msra.mxu0 0.0
        %366 = vmatprep.subr.mxu0 0.0
        %367 = vmatpush2.msra.mxu0 0.0
        %368 = vmatprep.subr.mxu0 0.0
        %369 = vmatpush2.msra.mxu0 0.0
        %370 = vmatprep.subr.mxu0 0.0
        %371 = vmatpush2.msra.mxu0 0.0
        %372 = vmatprep.subr.mxu0 0.0
        %373 = vmatpush2.msra.mxu0 0.0
        %374 = vmatprep.subr.mxu0 0.0
        %375 = vmatpush2.msra.mxu0 0.0
        %376 = vmatprep.subr.mxu0 0.0
        %377 = vmatpush2.msra.mxu0 0.0
        %378 = vmatprep.subr.mxu0 0.0
        %379 = vmatpush2.msra.mxu0 0.0
        %380 = vmatprep.subr.mxu0 0.0
        %381 = vmatpush2.msra.mxu0 0.0
        %382 = vmatprep.subr.mxu0 0.0
        %383 = vmatpush2.msra.mxu0 0.0
        %384 = vmatprep.mubr.f32.mxu0 0.0
        %385 = vmatmul.mubr.f32.gmra.mxu0 %v274
        %v386 = vpop.f32.mrf.mxu0
        %v387 = vadd.f32 %v313, %v386
        %v388 = vpop.f32.mrf.mxu0
        %v389 = vadd.f32 %v317, %v388
        %390 = vmatprep.mubr.f32.mxu0 0.0
        %391 = vmatmul.mubr.f32.gmra.mxu0 %v275
        %v392 = vpop.f32.mrf.mxu0
        %v393 = vadd.f32 %v313, %v392
        %v394 = vpop.f32.mrf.mxu0
        %v395 = vadd.f32 %v317, %v394
        %396 = vdwg.mxu0
        %v397 = vmax.f32 %v387, 0.0
        %v398 = vmax.f32 %v389, 0.0
        %v399 = vmax.f32 %v393, 0.0
        %v400 = vmax.f32 %v395, 0.0
        %s401 = scalar_lea.vmem [#allocation7], 256
        %v402 = vld [vmem:[%s401] sm:$0xff]
        %v403 = vld [vmem:[%s401 + $0x8] sm:$0xff]
        %v404 = vld [vmem:[%s401 + $0x10] sm:$0xff]
        %v405 = vld [vmem:[%s401 + $0x18] sm:$0xff]
        %v406 = vld [vmem:[%s401 + $0x20] sm:$0xff]
        %v407 = vld [vmem:[%s401 + $0x28] sm:$0xff]
        %v408 = vld [vmem:[%s401 + $0x30] sm:$0xff]
        %v409 = vld [vmem:[%s401 + $0x38] sm:$0xff]
        %v410 = vld [vmem:[%s401 + $0x40] sm:$0xff]
        %v411 = vld [vmem:[%s401 + $0x48] sm:$0xff]
        %v412 = vld [vmem:[%s401 + $0x50] sm:$0xff]
        %v413 = vld [vmem:[%s401 + $0x58] sm:$0xff]
        %v414 = vld [vmem:[%s401 + $0x60] sm:$0xff]
        %v415 = vld [vmem:[%s401 + $0x68] sm:$0xff]
        %v416 = vld [vmem:[%s401 + $0x70] sm:$0xff]
        %v417 = vld [vmem:[%s401 + $0x78] sm:$0xff]
        %v418 = vld [vmem:[%s401 + $0x80] sm:$0xff]
        %v419 = vld [vmem:[%s401 + $0x88] sm:$0xff]
        %v420 = vld [vmem:[%s401 + $0x90] sm:$0xff]
        %v421 = vld [vmem:[%s401 + $0x98] sm:$0xff]
        %v422 = vld [vmem:[%s401 + $0xa0] sm:$0xff]
        %v423 = vld [vmem:[%s401 + $0xa8] sm:$0xff]
        %v424 = vld [vmem:[%s401 + $0xb0] sm:$0xff]
        %v425 = vld [vmem:[%s401 + $0xb8] sm:$0xff]
        %v426 = vld [vmem:[%s401 + $0xc0] sm:$0xff]
        %v427 = vld [vmem:[%s401 + $0xc8] sm:$0xff]
        %v428 = vld [vmem:[%s401 + $0xd0] sm:$0xff]
        %v429 = vld [vmem:[%s401 + $0xd8] sm:$0xff]
        %v430 = vld [vmem:[%s401 + $0xe0] sm:$0xff]
        %v431 = vld [vmem:[%s401 + $0xe8] sm:$0xff]
        %v432 = vld [vmem:[%s401 + $0xf0] sm:$0xff]
        %v433 = vld [vmem:[%s401 + $0xf8] sm:$0xff]
        %v434 = vld [vmem:[%s4] sm:$0x1]
        %v436 = vlaneseq
        %v437 = vshrl.u32 %v436, 7
        %v438 = vsub.s32 0, %v437
        %v439 = vrot.slane %v434, %v438
        %441 = vmatprep.subr.mxu0 0.0
        %442 = vmatpush1.msra.mxu0 %v417
        %443 = vmatprep.subr.mxu0 0.0
        %444 = vmatpush1.msra.mxu0 %v416
        %445 = vmatprep.subr.mxu0 0.0
        %446 = vmatpush1.msra.mxu0 %v415
        %447 = vmatprep.subr.mxu0 0.0
        %448 = vmatpush1.msra.mxu0 %v414
        %449 = vmatprep.subr.mxu0 0.0
        %450 = vmatpush1.msra.mxu0 %v413
        %451 = vmatprep.subr.mxu0 0.0
        %452 = vmatpush1.msra.mxu0 %v412
        %453 = vmatprep.subr.mxu0 0.0
        %454 = vmatpush1.msra.mxu0 %v411
        %455 = vmatprep.subr.mxu0 0.0
        %456 = vmatpush1.msra.mxu0 %v410
        %457 = vmatprep.subr.mxu0 0.0
        %458 = vmatpush1.msra.mxu0 %v409
        %459 = vmatprep.subr.mxu0 0.0
        %460 = vmatpush1.msra.mxu0 %v408
        %461 = vmatprep.subr.mxu0 0.0
        %462 = vmatpush1.msra.mxu0 %v407
        %463 = vmatprep.subr.mxu0 0.0
        %464 = vmatpush1.msra.mxu0 %v406
        %465 = vmatprep.subr.mxu0 0.0
        %466 = vmatpush1.msra.mxu0 %v405
        %467 = vmatprep.subr.mxu0 0.0
        %468 = vmatpush1.msra.mxu0 %v404
        %469 = vmatprep.subr.mxu0 0.0
        %470 = vmatpush1.msra.mxu0 %v403
        %471 = vmatprep.subr.mxu0 0.0
        %472 = vmatpush1.msra.mxu0 %v402
        %473 = vmatprep.subr.mxu0 0.0
        %474 = vmatpush2.msra.mxu0 %v433
        %475 = vmatprep.subr.mxu0 0.0
        %476 = vmatpush2.msra.mxu0 %v432
        %477 = vmatprep.subr.mxu0 0.0
        %478 = vmatpush2.msra.mxu0 %v431
        %479 = vmatprep.subr.mxu0 0.0
        %480 = vmatpush2.msra.mxu0 %v430
        %481 = vmatprep.subr.mxu0 0.0
        %482 = vmatpush2.msra.mxu0 %v429
        %483 = vmatprep.subr.mxu0 0.0
        %484 = vmatpush2.msra.mxu0 %v428
        %485 = vmatprep.subr.mxu0 0.0
        %486 = vmatpush2.msra.mxu0 %v427
        %487 = vmatprep.subr.mxu0 0.0
        %488 = vmatpush2.msra.mxu0 %v426
        %489 = vmatprep.subr.mxu0 0.0
        %490 = vmatpush2.msra.mxu0 %v425
        %491 = vmatprep.subr.mxu0 0.0
        %492 = vmatpush2.msra.mxu0 %v424
        %493 = vmatprep.subr.mxu0 0.0
        %494 = vmatpush2.msra.mxu0 %v423
        %495 = vmatprep.subr.mxu0 0.0
        %496 = vmatpush2.msra.mxu0 %v422
        %497 = vmatprep.subr.mxu0 0.0
        %498 = vmatpush2.msra.mxu0 %v421
        %499 = vmatprep.subr.mxu0 0.0
        %500 = vmatpush2.msra.mxu0 %v420
        %501 = vmatprep.subr.mxu0 0.0
        %502 = vmatpush2.msra.mxu0 %v419
        %503 = vmatprep.subr.mxu0 0.0
        %504 = vmatpush2.msra.mxu0 %v418
        %505 = vmatprep.mubr.f32.mxu0 %v398
        %506 = vmatmul.mubr.f32.gmra.mxu0 %v397
        %v507 = vpop.f32.mrf.mxu0
        %v508 = vadd.f32 %v439, %v507
        %v509 = vpop.f32.mrf.mxu0
        %510 = vmatprep.mubr.f32.mxu0 %v400
        %511 = vmatmul.mubr.f32.gmra.mxu0 %v399
        %v512 = vpop.f32.mrf.mxu0
        %v513 = vadd.f32 %v439, %v512
        %v514 = vpop.f32.mrf.mxu0
        %515 = vdwg.mxu0
        %v516 = vlaneseq
        %v517 = vshrl.u32 %v516, 7
        %v518 = vadd.s32 %v517, 8
        %v519 = vrot.slane %v397, 7
        %v520 = vrot.slane %v398, 7
        %v521 = vrot.slane %v399, 7
        %v522 = vrot.slane %v400, 7
        %vm523 = vcmp.lt.s32.totalorder %v517, 1
        %v524 = vsel %vm523, %v519, %v521
        %v525 = vsel %vm523, %v520, %v522
        %v526 = vsel %vm523, %v521, %v519
        %v527 = vsel %vm523, %v522, %v520
        %v528 = vadd.s32 %v517, 4294967295
        %v529 = vadd.s32 %v518, 4294967295
        %vm530 = vcmp.ge.s32.totalorder %v528, 0
        %vm531 = vcmp.ge.s32.totalorder %v529, 0
        %vm532 = vcmp.lt.s32.totalorder %v528, 16
        %vm533 = vcmp.lt.s32.totalorder %v529, 16
        %vm534 = vmand %vm530, %vm532
        %vm535 = vmand %vm531, %vm533
        %v536 = vsel %vm534, 1, 0
        %v537 = vsel %vm535, 1, 0
        %vm538 = vcmp.eq.s32.totalorder %v536, 1
        %vm539 = vcmp.eq.s32.totalorder %v537, 1
        %v540 = vsel %vm538, %v526, 0.0
        %v541 = vsel %vm538, %v527, 0.0
        %v542 = vsel %vm539, %v524, 0.0
        %v543 = vsel %vm539, %v525, 0.0
        %v544 = vld [vmem:[#allocation7] sm:$0xff]
        %v545 = vld [vmem:[#allocation7 + $0x8] sm:$0xff]
        %v546 = vld [vmem:[#allocation7 + $0x10] sm:$0xff]
        %v547 = vld [vmem:[#allocation7 + $0x18] sm:$0xff]
        %v548 = vld [vmem:[#allocation7 + $0x20] sm:$0xff]
        %v549 = vld [vmem:[#allocation7 + $0x28] sm:$0xff]
        %v550 = vld [vmem:[#allocation7 + $0x30] sm:$0xff]
        %v551 = vld [vmem:[#allocation7 + $0x38] sm:$0xff]
        %v552 = vld [vmem:[#allocation7 + $0x40] sm:$0xff]
        %v553 = vld [vmem:[#allocation7 + $0x48] sm:$0xff]
        %v554 = vld [vmem:[#allocation7 + $0x50] sm:$0xff]
        %v555 = vld [vmem:[#allocation7 + $0x58] sm:$0xff]
        %v556 = vld [vmem:[#allocation7 + $0x60] sm:$0xff]
        %v557 = vld [vmem:[#allocation7 + $0x68] sm:$0xff]
        %v558 = vld [vmem:[#allocation7 + $0x70] sm:$0xff]
        %v559 = vld [vmem:[#allocation7 + $0x78] sm:$0xff]
        %v560 = vld [vmem:[#allocation7 + $0x80] sm:$0xff]
        %v561 = vld [vmem:[#allocation7 + $0x88] sm:$0xff]
        %v562 = vld [vmem:[#allocation7 + $0x90] sm:$0xff]
        %v563 = vld [vmem:[#allocation7 + $0x98] sm:$0xff]
        %v564 = vld [vmem:[#allocation7 + $0xa0] sm:$0xff]
        %v565 = vld [vmem:[#allocation7 + $0xa8] sm:$0xff]
        %v566 = vld [vmem:[#allocation7 + $0xb0] sm:$0xff]
        %v567 = vld [vmem:[#allocation7 + $0xb8] sm:$0xff]
        %v568 = vld [vmem:[#allocation7 + $0xc0] sm:$0xff]
        %v569 = vld [vmem:[#allocation7 + $0xc8] sm:$0xff]
        %v570 = vld [vmem:[#allocation7 + $0xd0] sm:$0xff]
        %v571 = vld [vmem:[#allocation7 + $0xd8] sm:$0xff]
        %v572 = vld [vmem:[#allocation7 + $0xe0] sm:$0xff]
        %v573 = vld [vmem:[#allocation7 + $0xe8] sm:$0xff]
        %v574 = vld [vmem:[#allocation7 + $0xf0] sm:$0xff]
        %v575 = vld [vmem:[#allocation7 + $0xf8] sm:$0xff]
        %576 = vmatprep.subr.mxu0 0.0
        %577 = vmatpush1.msra.mxu0 %v559
        %578 = vmatprep.subr.mxu0 0.0
        %579 = vmatpush1.msra.mxu0 %v558
        %580 = vmatprep.subr.mxu0 0.0
        %581 = vmatpush1.msra.mxu0 %v557
        %582 = vmatprep.subr.mxu0 0.0
        %583 = vmatpush1.msra.mxu0 %v556
        %584 = vmatprep.subr.mxu0 0.0
        %585 = vmatpush1.msra.mxu0 %v555
        %586 = vmatprep.subr.mxu0 0.0
        %587 = vmatpush1.msra.mxu0 %v554
        %588 = vmatprep.subr.mxu0 0.0
        %589 = vmatpush1.msra.mxu0 %v553
        %590 = vmatprep.subr.mxu0 0.0
        %591 = vmatpush1.msra.mxu0 %v552
        %592 = vmatprep.subr.mxu0 0.0
        %593 = vmatpush1.msra.mxu0 %v551
        %594 = vmatprep.subr.mxu0 0.0
        %595 = vmatpush1.msra.mxu0 %v550
        %596 = vmatprep.subr.mxu0 0.0
        %597 = vmatpush1.msra.mxu0 %v549
        %598 = vmatprep.subr.mxu0 0.0
        %599 = vmatpush1.msra.mxu0 %v548
        %600 = vmatprep.subr.mxu0 0.0
        %601 = vmatpush1.msra.mxu0 %v547
        %602 = vmatprep.subr.mxu0 0.0
        %603 = vmatpush1.msra.mxu0 %v546
        %604 = vmatprep.subr.mxu0 0.0
        %605 = vmatpush1.msra.mxu0 %v545
        %606 = vmatprep.subr.mxu0 0.0
        %607 = vmatpush1.msra.mxu0 %v544
        %608 = vmatprep.subr.mxu0 0.0
        %609 = vmatpush2.msra.mxu0 %v575
        %610 = vmatprep.subr.mxu0 0.0
        %611 = vmatpush2.msra.mxu0 %v574
        %612 = vmatprep.subr.mxu0 0.0
        %613 = vmatpush2.msra.mxu0 %v573
        %614 = vmatprep.subr.mxu0 0.0
        %615 = vmatpush2.msra.mxu0 %v572
        %616 = vmatprep.subr.mxu0 0.0
        %617 = vmatpush2.msra.mxu0 %v571
        %618 = vmatprep.subr.mxu0 0.0
        %619 = vmatpush2.msra.mxu0 %v570
        %620 = vmatprep.subr.mxu0 0.0
        %621 = vmatpush2.msra.mxu0 %v569
        %622 = vmatprep.subr.mxu0 0.0
        %623 = vmatpush2.msra.mxu0 %v568
        %624 = vmatprep.subr.mxu0 0.0
        %625 = vmatpush2.msra.mxu0 %v567
        %626 = vmatprep.subr.mxu0 0.0
        %627 = vmatpush2.msra.mxu0 %v566
        %628 = vmatprep.subr.mxu0 0.0
        %629 = vmatpush2.msra.mxu0 %v565
        %630 = vmatprep.subr.mxu0 0.0
        %631 = vmatpush2.msra.mxu0 %v564
        %632 = vmatprep.subr.mxu0 0.0
        %633 = vmatpush2.msra.mxu0 %v563
        %634 = vmatprep.subr.mxu0 0.0
        %635 = vmatpush2.msra.mxu0 %v562
        %636 = vmatprep.subr.mxu0 0.0
        %637 = vmatpush2.msra.mxu0 %v561
        %638 = vmatprep.subr.mxu0 0.0
        %639 = vmatpush2.msra.mxu0 %v560
        %640 = vmatprep.mubr.f32.mxu0 %v541
        %641 = vmatmul.mubr.f32.gmra.mxu0 %v540
        %v642 = vpop.f32.mrf.mxu0
        %v643 = vadd.f32 0.0, %v642
        %v644 = vpop.f32.mrf.mxu0
        %645 = vmatprep.mubr.f32.mxu0 %v543
        %646 = vmatmul.mubr.f32.gmra.mxu0 %v542
        %v647 = vpop.f32.mrf.mxu0
        %v648 = vadd.f32 0.0, %v647
        %v649 = vpop.f32.mrf.mxu0
        %650 = vdwg.mxu0
        %v651 = vadd.f32 %v508, %v643
        %v652 = vadd.f32 %v513, %v648
        %v653 = vrot.slane %v397, 1
        %v654 = vrot.slane %v398, 1
        %v655 = vrot.slane %v399, 1
        %v656 = vrot.slane %v400, 1
        %vm657 = vcmp.lt.s32.totalorder %v517, 7
        %v658 = vsel %vm657, %v653, %v655
        %v659 = vsel %vm657, %v654, %v656
        %v660 = vsel %vm657, %v655, %v653
        %v661 = vsel %vm657, %v656, %v654
        %v662 = vadd.s32 %v517, 1
        %v663 = vadd.s32 %v518, 1
        %vm664 = vcmp.ge.s32.totalorder %v662, 0
        %vm665 = vcmp.ge.s32.totalorder %v663, 0
        %vm666 = vcmp.lt.s32.totalorder %v662, 16
        %vm667 = vcmp.lt.s32.totalorder %v663, 16
        %vm668 = vmand %vm664, %vm666
        %vm669 = vmand %vm665, %vm667
        %v670 = vsel %vm668, 1, 0
        %v671 = vsel %vm669, 1, 0
        %vm672 = vcmp.eq.s32.totalorder %v670, 1
        %vm673 = vcmp.eq.s32.totalorder %v671, 1
        %v674 = vsel %vm672, %v658, 0.0
        %v675 = vsel %vm672, %v659, 0.0
        %v676 = vsel %vm673, %v660, 0.0
        %v677 = vsel %vm673, %v661, 0.0
        %s678 = scalar_lea.vmem [#allocation7], 512
        %v679 = vld [vmem:[%s678] sm:$0xff]
        %v680 = vld [vmem:[%s678 + $0x8] sm:$0xff]
        %v681 = vld [vmem:[%s678 + $0x10] sm:$0xff]
        %v682 = vld [vmem:[%s678 + $0x18] sm:$0xff]
        %v683 = vld [vmem:[%s678 + $0x20] sm:$0xff]
        %v684 = vld [vmem:[%s678 + $0x28] sm:$0xff]
        %v685 = vld [vmem:[%s678 + $0x30] sm:$0xff]
        %v686 = vld [vmem:[%s678 + $0x38] sm:$0xff]
        %v687 = vld [vmem:[%s678 + $0x40] sm:$0xff]
        %v688 = vld [vmem:[%s678 + $0x48] sm:$0xff]
        %v689 = vld [vmem:[%s678 + $0x50] sm:$0xff]
        %v690 = vld [vmem:[%s678 + $0x58] sm:$0xff]
        %v691 = vld [vmem:[%s678 + $0x60] sm:$0xff]
        %v692 = vld [vmem:[%s678 + $0x68] sm:$0xff]
        %v693 = vld [vmem:[%s678 + $0x70] sm:$0xff]
        %v694 = vld [vmem:[%s678 + $0x78] sm:$0xff]
        %v695 = vld [vmem:[%s678 + $0x80] sm:$0xff]
        %v696 = vld [vmem:[%s678 + $0x88] sm:$0xff]
        %v697 = vld [vmem:[%s678 + $0x90] sm:$0xff]
        %v698 = vld [vmem:[%s678 + $0x98] sm:$0xff]
        %v699 = vld [vmem:[%s678 + $0xa0] sm:$0xff]
        %v700 = vld [vmem:[%s678 + $0xa8] sm:$0xff]
        %v701 = vld [vmem:[%s678 + $0xb0] sm:$0xff]
        %v702 = vld [vmem:[%s678 + $0xb8] sm:$0xff]
        %v703 = vld [vmem:[%s678 + $0xc0] sm:$0xff]
        %v704 = vld [vmem:[%s678 + $0xc8] sm:$0xff]
        %v705 = vld [vmem:[%s678 + $0xd0] sm:$0xff]
        %v706 = vld [vmem:[%s678 + $0xd8] sm:$0xff]
        %v707 = vld [vmem:[%s678 + $0xe0] sm:$0xff]
        %v708 = vld [vmem:[%s678 + $0xe8] sm:$0xff]
        %v709 = vld [vmem:[%s678 + $0xf0] sm:$0xff]
        %v710 = vld [vmem:[%s678 + $0xf8] sm:$0xff]
        %711 = vmatprep.subr.mxu0 0.0
        %712 = vmatpush1.msra.mxu0 %v694
        %713 = vmatprep.subr.mxu0 0.0
        %714 = vmatpush1.msra.mxu0 %v693
        %715 = vmatprep.subr.mxu0 0.0
        %716 = vmatpush1.msra.mxu0 %v692
        %717 = vmatprep.subr.mxu0 0.0
        %718 = vmatpush1.msra.mxu0 %v691
        %719 = vmatprep.subr.mxu0 0.0
        %720 = vmatpush1.msra.mxu0 %v690
        %721 = vmatprep.subr.mxu0 0.0
        %722 = vmatpush1.msra.mxu0 %v689
        %723 = vmatprep.subr.mxu0 0.0
        %724 = vmatpush1.msra.mxu0 %v688
        %725 = vmatprep.subr.mxu0 0.0
        %726 = vmatpush1.msra.mxu0 %v687
        %727 = vmatprep.subr.mxu0 0.0
        %728 = vmatpush1.msra.mxu0 %v686
        %729 = vmatprep.subr.mxu0 0.0
        %730 = vmatpush1.msra.mxu0 %v685
        %731 = vmatprep.subr.mxu0 0.0
        %732 = vmatpush1.msra.mxu0 %v684
        %733 = vmatprep.subr.mxu0 0.0
        %734 = vmatpush1.msra.mxu0 %v683
        %735 = vmatprep.subr.mxu0 0.0
        %736 = vmatpush1.msra.mxu0 %v682
        %737 = vmatprep.subr.mxu0 0.0
        %738 = vmatpush1.msra.mxu0 %v681
        %739 = vmatprep.subr.mxu0 0.0
        %740 = vmatpush1.msra.mxu0 %v680
        %741 = vmatprep.subr.mxu0 0.0
        %742 = vmatpush1.msra.mxu0 %v679
        %743 = vmatprep.subr.mxu0 0.0
        %744 = vmatpush2.msra.mxu0 %v710
        %745 = vmatprep.subr.mxu0 0.0
        %746 = vmatpush2.msra.mxu0 %v709
        %747 = vmatprep.subr.mxu0 0.0
        %748 = vmatpush2.msra.mxu0 %v708
        %749 = vmatprep.subr.mxu0 0.0
        %750 = vmatpush2.msra.mxu0 %v707
        %751 = vmatprep.subr.mxu0 0.0
        %752 = vmatpush2.msra.mxu0 %v706
        %753 = vmatprep.subr.mxu0 0.0
        %754 = vmatpush2.msra.mxu0 %v705
        %755 = vmatprep.subr.mxu0 0.0
        %756 = vmatpush2.msra.mxu0 %v704
        %757 = vmatprep.subr.mxu0 0.0
        %758 = vmatpush2.msra.mxu0 %v703
        %759 = vmatprep.subr.mxu0 0.0
        %760 = vmatpush2.msra.mxu0 %v702
        %761 = vmatprep.subr.mxu0 0.0
        %762 = vmatpush2.msra.mxu0 %v701
        %763 = vmatprep.subr.mxu0 0.0
        %764 = vmatpush2.msra.mxu0 %v700
        %765 = vmatprep.subr.mxu0 0.0
        %766 = vmatpush2.msra.mxu0 %v699
        %767 = vmatprep.subr.mxu0 0.0
        %768 = vmatpush2.msra.mxu0 %v698
        %769 = vmatprep.subr.mxu0 0.0
        %770 = vmatpush2.msra.mxu0 %v697
        %771 = vmatprep.subr.mxu0 0.0
        %772 = vmatpush2.msra.mxu0 %v696
        %773 = vmatprep.subr.mxu0 0.0
        %774 = vmatpush2.msra.mxu0 %v695
        %775 = vmatprep.mubr.f32.mxu0 %v675
        %776 = vmatmul.mubr.f32.gmra.mxu0 %v674
        %v777 = vpop.f32.mrf.mxu0
        %v778 = vadd.f32 0.0, %v777
        %v779 = vpop.f32.mrf.mxu0
        %780 = vmatprep.mubr.f32.mxu0 %v677
        %781 = vmatmul.mubr.f32.gmra.mxu0 %v676
        %v782 = vpop.f32.mrf.mxu0
        %v783 = vadd.f32 0.0, %v782
        %v784 = vpop.f32.mrf.mxu0
        %785 = vdwg.mxu0
        %v786 = vadd.f32 %v651, %v778
        %v787 = vadd.f32 %v652, %v783
        %788 = vst [vmem:[%s271] sm:$0xff] %v786
        %789 = vst [vmem:[%s271 + $0x8] sm:$0xff] %v787
        %s790 = sand.u32 %s141, 1
        %s791 = scalar_lea.sflag [#allocation4], %s790
        %s792 = sand.u32 %s141, 1
        %s793 = smul.addr %s792, 16
        %s794 = scalar_lea.vmem [#allocation8], %s793
        // Predicated region
        $region53: #{tpu_custom_call.1} parent=39 // pred_check
          %p795 = pneg %p151
        $region54: #{tpu_custom_call.1} parent=39 // pred_check_branch
          %797 = sbr.rel (%p795) target = $region56
        $region55: #{tpu_custom_call.1} parent=39 // pred_region
          %s798 = smul.u32 2, %s23
          %s800 = ssub.s32 256, 256
          %801 = vsyncadd %s791, %s800
          %s802 = smul.addr %s798, 128
          %s803 = scalar_lea.hbm %s5, %s802
          %s804 = sshll.u32 %s794, 4
          %s805 = int_to_ptr.vmem [resolvable:$true] %s804
          %810 = dma.vmem_to_hbm [thread:$0]  %s805, 256, %s803, %s791, 128, 128, 8
        $region56: #{tpu_custom_call.1} parent=39 // pred_fallthru
          _
      $region40: #{tpu_custom_call.1} parent=5 // pred_fallthru
        _
      %p811 = scmp.le.s32.totalorder 2, %s18
      // Predicated region
      $region57: #{tpu_custom_call.1} parent=5 // pred_check
        %p812 = pneg %p811
      $region58: #{tpu_custom_call.1} parent=5 // pred_check_branch
        %814 = sbr.rel (%p812) target = $region60
      $region59: #{tpu_custom_call.1} parent=5 // pred_region
        %s815 = ssub.s32 %s18, 2
        // Predicated region
        $region61: #{tpu_custom_call.1} parent=59 // pred_check
          %p816 = pneg %p157
        $region62: #{tpu_custom_call.1} parent=59 // pred_check_branch
          %818 = sbr.rel (%p816) target = $region64
        $region63: #{tpu_custom_call.1} parent=59 // pred_region
          %s819 = sand.u32 %s142, 1
          %s820 = scalar_lea.sflag [#allocation4], %s819
          %s821 = sand.u32 %s142, 1
          %s822 = smul.addr %s821, 16
          %s823 = scalar_lea.vmem [#allocation8], %s822
          %824 = dma.done %s820, 256
        $region64: #{tpu_custom_call.1} parent=59 // pred_fallthru
          _
      $region60: #{tpu_custom_call.1} parent=5 // pred_fallthru
        _
    $region6: #{tpu_custom_call.1} parent=1 // loop_footer
      %s22 = sadd.s32 1, %s18
    $region7: #{tpu_custom_call.1} parent=1 // loop_footer_branch
      %17 = sbr.rel target = $region3
    $region8: #{tpu_custom_call.1} parent=1 // loop_exit
      _
    %825 = vsyncpa [#allocation3], 1
    %s826 = scalar_lea.sflag [#allocation3], 1
    %827 = vsyncpa %s826, 1
    %828 = vsyncpa [#allocation6], 1
    %829 = vsyncpa [#allocation4], 1
    %s830 = scalar_lea.sflag [#allocation4], 1
    %831 = vsyncpa %s830, 1

// kernel: tpu_custom_call.1
$region0: #{tpu_custom_call.1}
  #allocation0 [shape = 'u32[]', space=smem, size = 0x4, offset = 0x4, fixed_abs, tag = 'smem constant byte address 0x4 - core index']
  #allocation1 [shape = 'u32[144,128]{1,0:T(1,128)}', space=vmem, size = 0x12000, scoped, tag = 'internal scratch']
  %s0 = inlined_call_operand.hbm [shape: f32[32,128], index: 0, kind: input, shape index: {}]
  %s1 = inlined_call_operand.hbm [shape: f32[128,256], index: 1, kind: input, shape index: {}]
  %s2 = inlined_call_operand.vmem [shape: f32[1,256], index: 2, kind: input, shape index: {}]
  %s3 = inlined_call_operand.hbm [shape: f32[3,256,128], index: 3, kind: input, shape index: {}]
  %s4 = inlined_call_operand.vmem [shape: f32[1,128], index: 4, kind: input, shape index: {}]
  %s5 = inlined_call_operand.hbm [shape: f32[32,128], index: 5, kind: output, shape index: {}]
  %s6 = sld [smem:[#allocation0]]
  $region65: #{tpu_custom_call.1} parent=0
    _
  %s8 = ssub.s32 1, %s6
  %s9 = scalar_select 0, %s8, %s6
  $region1: #{tpu_custom_call.1} parent=0
    #allocation2 [shape = 'u8[16384]{0}', space=vmem, size = 0x4000, scoped, tag = 'input window, operand 0']
    #allocation3 [shape = 's32[2]{0}', space=sflag, size = 0x8, scoped, tag = 'scoped memory for tpu_custom_call.1']
    #allocation4 [shape = 's32[2]{0}', space=sflag, size = 0x8, scoped, tag = 'scoped memory for tpu_custom_call.1']
    #allocation5 [shape = 'u8[131072]{0}', space=vmem, size = 0x20000, scoped, tag = 'input window, operand 1, single buffered']
    #allocation6 [shape = 's32[1]{0}', space=sflag, size = 0x4, scoped, tag = 'scoped memory for tpu_custom_call.1']
    #allocation7 [shape = 'u8[393216]{0}', space=vmem, size = 0x60000, scoped, tag = 'input window, operand 3, single buffered']
    #allocation8 [shape = 'u8[16384]{0}', space=vmem, size = 0x4000, scoped, tag = 'output window, operand 0']
    %10 = vsyncpa [#allocation3], 0
    %s11 = scalar_lea.sflag [#allocation3], 1
    %12 = vsyncpa %s11, 0
    %13 = vsyncpa [#allocation6], 0
    %14 = vsyncpa [#allocation4], 0
    %s15 = scalar_lea.sflag [#allocation4], 1
    %16 = vsyncpa %s15, 0
    loop: start=0, step=1, limit=4
    $region2: #{tpu_custom_call.1} parent=1 // loop_pre_header
      _
    $region3: #{tpu_custom_call.1} parent=1 // loop_header
      %s18 = sphi 0, %s22
      %p19 = scmp.ge.s32.totalorder %s18, 4
      %s28 = sphi 0, %s30
      %s31 = sphi 0, %s28
      %s32 = sphi 0, %s31
      %s48 = sphi 0, %s32
      %s52 = sphi 0, %s52
      %s54 = sphi 0, %s52
      %s55 = sphi 0, %s54
      %s69 = sphi 0, %s55
      %s73 = sphi 0, %s73
      %s75 = sphi 0, %s73
      %s76 = sphi 0, %s75
      %s90 = sphi 0, %s76
      %s94 = sphi 0, %s94
      %s96 = sphi 0, %s94
      %s97 = sphi 0, %s96
      %s111 = sphi 0, %s97
      %s115 = sphi 0, %s115
      %s117 = sphi 0, %s115
      %s118 = sphi 0, %s117
      %s132 = sphi 0, %s118
      %s138 = sphi 0, %s140
      %s141 = sphi 0, %s138
      %s142 = sphi 0, %s141
      %s158 = sphi 0, %s142
    $region4: #{tpu_custom_call.1} parent=1 // loop_header_branch
      %21 = sbr.rel (%p19) target = $region8
    $region5: #{tpu_custom_call.1} parent=1 // loop_body
      %s23 = ssub.s32 %s18, 1
      %s24 = ssub.s32 %s18, 2
      %s25 = sadd.s32 %s18, 1
      %s26 = ssub.s32 %s18, %s25
      %p27 = scmp.eq.s32.totalorder %s26, 0
      %s29 = sadd.s32 %s28, 1
      %s30 = scalar_select %p27, %s28, %s29
      %p33 = pneg %p27
      %p34 = scmp.eq.s32.totalorder %s18, 1
      %p35 = por %p33, %p34
      %p36 = scmp.ne.s32.totalorder %s28, %s31
      %p37 = scmp.eq.s32.totalorder %s18, 0
      %p38 = por %p36, %p37
      %p39 = scmp.ne.s32.totalorder %s28, %s31
      %p40 = scmp.eq.s32.totalorder %s23, 1
      %p41 = por %p39, %p40
      %p42 = scmp.ne.s32.totalorder %s31, %s32
      %p43 = scmp.eq.s32.totalorder %s23, 0
      %p44 = por %p42, %p43
      %p45 = scmp.ne.s32.totalorder %s31, %s32
      %p46 = scmp.eq.s32.totalorder %s24, 1
      %p47 = por %p45, %p46
      %p49 = scmp.ne.s32.totalorder %s32, %s48
      %p50 = scmp.eq.s32.totalorder %s24, 0
      %p51 = por %p49, %p50
      %s53 = sadd.s32 %s52, 1
      %p56 = scmp.eq.s32.totalorder %s18, 1
      %p57 = scmp.ne.s32.totalorder %s52, %s54
      %p58 = scmp.eq.s32.totalorder %s18, 0
      %p59 = por %p57, %p58
      %p60 = scmp.ne.s32.totalorder %s52, %s54
      %p61 = scmp.eq.s32.totalorder %s23, 1
      %p62 = por %p60, %p61
      %p63 = scmp.ne.s32.totalorder %s54, %s55
      %p64 = scmp.eq.s32.totalorder %s23, 0
      %p65 = por %p63, %p64
      %p66 = scmp.ne.s32.totalorder %s54, %s55
      %p67 = scmp.eq.s32.totalorder %s24, 1
      %p68 = por %p66, %p67
      %p70 = scmp.ne.s32.totalorder %s55, %s69
      %p71 = scmp.eq.s32.totalorder %s24, 0
      %p72 = por %p70, %p71
      %s74 = sadd.s32 %s73, 1
      %p77 = scmp.eq.s32.totalorder %s18, 1
      %p78 = scmp.ne.s32.totalorder %s73, %s75
      %p79 = scmp.eq.s32.totalorder %s18, 0
      %p80 = por %p78, %p79
      %p81 = scmp.ne.s32.totalorder %s73, %s75
      %p82 = scmp.eq.s32.totalorder %s23, 1
      %p83 = por %p81, %p82
      %p84 = scmp.ne.s32.totalorder %s75, %s76
      %p85 = scmp.eq.s32.totalorder %s23, 0
      %p86 = por %p84, %p85
      %p87 = scmp.ne.s32.totalorder %s75, %s76
      %p88 = scmp.eq.s32.totalorder %s24, 1
      %p89 = por %p87, %p88
      %p91 = scmp.ne.s32.totalorder %s76, %s90
      %p92 = scmp.eq.s32.totalorder %s24, 0
      %p93 = por %p91, %p92
      %s95 = sadd.s32 %s94, 1
      %p98 = scmp.eq.s32.totalorder %s18, 1
      %p99 = scmp.ne.s32.totalorder %s94, %s96
      %p100 = scmp.eq.s32.totalorder %s18, 0
      %p101 = por %p99, %p100
      %p102 = scmp.ne.s32.totalorder %s94, %s96
      %p103 = scmp.eq.s32.totalorder %s23, 1
      %p104 = por %p102, %p103
      %p105 = scmp.ne.s32.totalorder %s96, %s97
      %p106 = scmp.eq.s32.totalorder %s23, 0
      %p107 = por %p105, %p106
      %p108 = scmp.ne.s32.totalorder %s96, %s97
      %p109 = scmp.eq.s32.totalorder %s24, 1
      %p110 = por %p108, %p109
      %p112 = scmp.ne.s32.totalorder %s97, %s111
      %p113 = scmp.eq.s32.totalorder %s24, 0
      %p114 = por %p112, %p113
      %s116 = sadd.s32 %s115, 1
      %p119 = scmp.eq.s32.totalorder %s18, 1
      %p120 = scmp.ne.s32.totalorder %s115, %s117
      %p121 = scmp.eq.s32.totalorder %s18, 0
      %p122 = por %p120, %p121
      %p123 = scmp.ne.s32.totalorder %s115, %s117
      %p124 = scmp.eq.s32.totalorder %s23, 1
      %p125 = por %p123, %p124
      %p126 = scmp.ne.s32.totalorder %s117, %s118
      %p127 = scmp.eq.s32.totalorder %s23, 0
      %p128 = por %p126, %p127
      %p129 = scmp.ne.s32.totalorder %s117, %s118
      %p130 = scmp.eq.s32.totalorder %s24, 1
      %p131 = por %p129, %p130
      %p133 = scmp.ne.s32.totalorder %s118, %s132
      %p134 = scmp.eq.s32.totalorder %s24, 0
      %p135 = por %p133, %p134
      %s136 = ssub.s32 %s18, %s25
      %p137 = scmp.eq.s32.totalorder %s136, 0
      %s139 = sadd.s32 %s138, 1
      %s140 = scalar_select %p137, %s138, %s139
      %p143 = pneg %p137
      %p144 = scmp.eq.s32.totalorder %s18, 1
      %p145 = por %p143, %p144
      %p146 = scmp.ne.s32.totalorder %s138, %s141
      %p147 = scmp.eq.s32.totalorder %s18, 0
      %p148 = por %p146, %p147
      %p149 = scmp.ne.s32.totalorder %s138, %s141
      %p150 = scmp.eq.s32.totalorder %s23, 1
      %p151 = por %p149, %p150
      %p152 = scmp.ne.s32.totalorder %s141, %s142
      %p153 = scmp.eq.s32.totalorder %s23, 0
      %p154 = por %p152, %p153
      %p155 = scmp.ne.s32.totalorder %s141, %s142
      %p156 = scmp.eq.s32.totalorder %s24, 1
      %p157 = por %p155, %p156
      %p159 = scmp.ne.s32.totalorder %s142, %s158
      %p160 = scmp.eq.s32.totalorder %s24, 0
      %p161 = por %p159, %p160
      %p162 = scmp.le.s32.totalorder 1, %s18
      %p163 = scmp.lt.s32.totalorder %s18, 3
      %p164 = pnand %p162, %p163
      %p165 = pneg %p164
      // Predicated region
      $region9: #{tpu_custom_call.1} parent=5 // pred_check
        _
      $region10: #{tpu_custom_call.1} parent=5 // pred_check_branch
        %167 = sbr.rel (%p164) target = $region12
      $region11: #{tpu_custom_call.1} parent=5 // pred_region
        %s168 = ssub.s32 %s18, 1
        // Predicated region
        $region13: #{tpu_custom_call.1} parent=11 // pred_check
          %p169 = pneg %p65
        $region14: #{tpu_custom_call.1} parent=11 // pred_check_branch
          %171 = sbr.rel (%p169) target = $region16
        $region15: #{tpu_custom_call.1} parent=11 // pred_region
          %s173 = ssub.s32 4096, 4096
          %174 = vsyncadd [#allocation6], %s173
          %s175 = sshll.u32 [#allocation5], 4
          %s176 = int_to_ptr.vmem [resolvable:$true] %s175
          %181 = dma.hbm_to_vmem [thread:$0]  %s1, 4096, %s176, [#allocation6], 256, 256, 16
        $region16: #{tpu_custom_call.1} parent=11 // pred_fallthru
          _
        // Predicated region
        $region17: #{tpu_custom_call.1} parent=11 // pred_check
          %p182 = pneg %p86
        $region18: #{tpu_custom_call.1} parent=11 // pred_check_branch
          %184 = sbr.rel (%p182) target = $region20
        $region19: #{tpu_custom_call.1} parent=11 // pred_region
          _
        $region20: #{tpu_custom_call.1} parent=11 // pred_fallthru
          _
        // Predicated region
        $region21: #{tpu_custom_call.1} parent=11 // pred_check
          %p185 = pneg %p107
        $region22: #{tpu_custom_call.1} parent=11 // pred_check_branch
          %187 = sbr.rel (%p185) target = $region24
        $region23: #{tpu_custom_call.1} parent=11 // pred_region
          %s189 = ssub.s32 12288, 12288
          %190 = vsyncadd [#allocation6], %s189
          %s191 = sshll.u32 [#allocation7], 4
          %s192 = int_to_ptr.vmem [resolvable:$true] %s191
          %197 = dma.hbm_to_vmem [thread:$0]  %s3, 12288, %s192, [#allocation6], 128, 128, 8
        $region24: #{tpu_custom_call.1} parent=11 // pred_fallthru
          _
        // Predicated region
        $region25: #{tpu_custom_call.1} parent=11 // pred_check
          %p198 = pneg %p128
        $region26: #{tpu_custom_call.1} parent=11 // pred_check_branch
          %200 = sbr.rel (%p198) target = $region28
        $region27: #{tpu_custom_call.1} parent=11 // pred_region
          _
        $region28: #{tpu_custom_call.1} parent=11 // pred_fallthru
          _
      $region12: #{tpu_custom_call.1} parent=5 // pred_fallthru
        _
      %p201 = scmp.lt.s32.totalorder %s18, 2
      // Predicated region
      $region29: #{tpu_custom_call.1} parent=5 // pred_check
        %p202 = pneg %p201
      $region30: #{tpu_custom_call.1} parent=5 // pred_check_branch
        %204 = sbr.rel (%p202) target = $region32
      $region31: #{tpu_custom_call.1} parent=5 // pred_region
        // Predicated region
        $region33: #{tpu_custom_call.1} parent=31 // pred_check
          %p205 = pneg %p38
        $region34: #{tpu_custom_call.1} parent=31 // pred_check_branch
          %207 = sbr.rel (%p205) target = $region36
        $region35: #{tpu_custom_call.1} parent=31 // pred_region
          %s208 = sand.u32 %s28, 1
          %s209 = scalar_lea.sflag [#allocation3], %s208
          %s210 = sand.u32 %s28, 1
          %s211 = smul.addr %s210, 16
          %s212 = scalar_lea.vmem [#allocation2], %s211
          %s213 = smul.u32 2, %s18
          %s215 = ssub.s32 256, 256
          %216 = vsyncadd %s209, %s215
          %s217 = smul.addr %s213, 128
          %s218 = scalar_lea.hbm %s0, %s217
          %s219 = sshll.u32 %s212, 4
          %s220 = int_to_ptr.vmem [resolvable:$true] %s219
          %225 = dma.hbm_to_vmem [thread:$0]  %s218, 256, %s220, %s209, 128, 128, 8
        $region36: #{tpu_custom_call.1} parent=31 // pred_fallthru
          _
      $region32: #{tpu_custom_call.1} parent=5 // pred_fallthru
        _
      %p226 = scmp.le.s32.totalorder 1, %s18
      %p227 = scmp.lt.s32.totalorder %s18, 3
      %p228 = pnand %p226, %p227
      %p229 = pneg %p228
      // Predicated region
      $region37: #{tpu_custom_call.1} parent=5 // pred_check
        _
      $region38: #{tpu_custom_call.1} parent=5 // pred_check_branch
        %231 = sbr.rel (%p228) target = $region40
      $region39: #{tpu_custom_call.1} parent=5 // pred_region
        %s232 = ssub.s32 %s18, 1
        %s233 = sand.u32 %s31, 1
        %s234 = scalar_lea.sflag [#allocation3], %s233
        %s235 = sand.u32 %s31, 1
        %s236 = smul.addr %s235, 16
        %s237 = scalar_lea.vmem [#allocation2], %s236
        // Predicated region
        $region41: #{tpu_custom_call.1} parent=39 // pred_check
          %p238 = pneg %p44
        $region42: #{tpu_custom_call.1} parent=39 // pred_check_branch
          %240 = sbr.rel (%p238) target = $region44
        $region43: #{tpu_custom_call.1} parent=39 // pred_region
          %241 = dma.done %s234, 256
        $region44: #{tpu_custom_call.1} parent=39 // pred_fallthru
          _
        // Predicated region
        $region45: #{tpu_custom_call.1} parent=39 // pred_check
          %p242 = pneg %p65
        $region46: #{tpu_custom_call.1} parent=39 // pred_check_branch
          %244 = sbr.rel (%p242) target = $region48
        $region47: #{tpu_custom_call.1} parent=39 // pred_region
          %245 = dma.done [#allocation6], 4096
        $region48: #{tpu_custom_call.1} parent=39 // pred_fallthru
          _
        // Predicated region
        $region49: #{tpu_custom_call.1} parent=39 // pred_check
          %p246 = pneg %p107
        $region50: #{tpu_custom_call.1} parent=39 // pred_check_branch
          %248 = sbr.rel (%p246) target = $region52
        $region51: #{tpu_custom_call.1} parent=39 // pred_region
          %249 = dma.done [#allocation6], 12288
        $region52: #{tpu_custom_call.1} parent=39 // pred_fallthru
          _
        %s250 = sand.u32 %s31, 1
        %s251 = scalar_lea.sflag [#allocation3], %s250
        %s252 = sand.u32 %s31, 1
        %s253 = smul.addr %s252, 16
        %s254 = scalar_lea.vmem [#allocation2], %s253
        %p255 = pneg %p44
        %p256 = pneg %p41
        %p257 = pneg %p65
        %p258 = pneg %p62
        %p259 = pneg %p86
        %p260 = pneg %p83
        %p261 = pneg %p107
        %p262 = pneg %p104
        %p263 = pneg %p128
        %p264 = pneg %p125
        %p265 = pneg %p154
        %p266 = pneg %p151
        %s267 = sand.u32 %s141, 1
        %s268 = scalar_lea.sflag [#allocation4], %s267
        %s269 = sand.u32 %s141, 1
        %s270 = smul.addr %s269, 16
        %s271 = scalar_lea.vmem [#allocation8], %s270
        %s272 = smul.u32 2, %s23
        %s273 = smul.u32 2, %s23
        %v274 = vld [vmem:[%s237] sm:$0xff]
        %v275 = vld [vmem:[%s237 + $0x8] sm:$0xff]
        %v276 = vld [vmem:[#allocation5] sm:$0xff]
        %v277 = vld [vmem:[#allocation5 + $0x8] sm:$0xff]
        %v278 = vld [vmem:[#allocation5 + $0x10] sm:$0xff]
        %v279 = vld [vmem:[#allocation5 + $0x18] sm:$0xff]
        %v280 = vld [vmem:[#allocation5 + $0x20] sm:$0xff]
        %v281 = vld [vmem:[#allocation5 + $0x28] sm:$0xff]
        %v282 = vld [vmem:[#allocation5 + $0x30] sm:$0xff]
        %v283 = vld [vmem:[#allocation5 + $0x38] sm:$0xff]
        %v284 = vld [vmem:[#allocation5 + $0x40] sm:$0xff]
        %v285 = vld [vmem:[#allocation5 + $0x48] sm:$0xff]
        %v286 = vld [vmem:[#allocation5 + $0x50] sm:$0xff]
        %v287 = vld [vmem:[#allocation5 + $0x58] sm:$0xff]
        %v288 = vld [vmem:[#allocation5 + $0x60] sm:$0xff]
        %v289 = vld [vmem:[#allocation5 + $0x68] sm:$0xff]
        %v290 = vld [vmem:[#allocation5 + $0x70] sm:$0xff]
        %v291 = vld [vmem:[#allocation5 + $0x78] sm:$0xff]
        %v292 = vld [vmem:[#allocation5 + $0x80] sm:$0xff]
        %v293 = vld [vmem:[#allocation5 + $0x88] sm:$0xff]
        %v294 = vld [vmem:[#allocation5 + $0x90] sm:$0xff]
        %v295 = vld [vmem:[#allocation5 + $0x98] sm:$0xff]
        %v296 = vld [vmem:[#allocation5 + $0xa0] sm:$0xff]
        %v297 = vld [vmem:[#allocation5 + $0xa8] sm:$0xff]
        %v298 = vld [vmem:[#allocation5 + $0xb0] sm:$0xff]
        %v299 = vld [vmem:[#allocation5 + $0xb8] sm:$0xff]
        %v300 = vld [vmem:[#allocation5 + $0xc0] sm:$0xff]
        %v301 = vld [vmem:[#allocation5 + $0xc8] sm:$0xff]
        %v302 = vld [vmem:[#allocation5 + $0xd0] sm:$0xff]
        %v303 = vld [vmem:[#allocation5 + $0xd8] sm:$0xff]
        %v304 = vld [vmem:[#allocation5 + $0xe0] sm:$0xff]
        %v305 = vld [vmem:[#allocation5 + $0xe8] sm:$0xff]
        %v306 = vld [vmem:[#allocation5 + $0xf0] sm:$0xff]
        %v307 = vld [vmem:[#allocation5 + $0xf8] sm:$0xff]
        %v308 = vld [vmem:[%s2] sm:$0x3]
        %v310 = vlaneseq
        %v311 = vshrl.u32 %v310, 7
        %v312 = vsub.s32 0, %v311
        %v313 = vrot.slane %v308, %v312
        %v314 = vlaneseq
        %v315 = vshrl.u32 %v314, 7
        %v316 = vsub.s32 1, %v315
        %v317 = vrot.slane %v308, %v316
        %320 = vmatprep.subr.mxu0 %v307
        %321 = vmatpush1.msra.mxu0 %v306
        %322 = vmatprep.subr.mxu0 %v305
        %323 = vmatpush1.msra.mxu0 %v304
        %324 = vmatprep.subr.mxu0 %v303
        %325 = vmatpush1.msra.mxu0 %v302
        %326 = vmatprep.subr.mxu0 %v301
        %327 = vmatpush1.msra.mxu0 %v300
        %328 = vmatprep.subr.mxu0 %v299
        %329 = vmatpush1.msra.mxu0 %v298
        %330 = vmatprep.subr.mxu0 %v297
        %331 = vmatpush1.msra.mxu0 %v296
        %332 = vmatprep.subr.mxu0 %v295
        %333 = vmatpush1.msra.mxu0 %v294
        %334 = vmatprep.subr.mxu0 %v293
        %335 = vmatpush1.msra.mxu0 %v292
        %336 = vmatprep.subr.mxu0 %v291
        %337 = vmatpush1.msra.mxu0 %v290
        %338 = vmatprep.subr.mxu0 %v289
        %339 = vmatpush1.msra.mxu0 %v288
        %340 = vmatprep.subr.mxu0 %v287
        %341 = vmatpush1.msra.mxu0 %v286
        %342 = vmatprep.subr.mxu0 %v285
        %343 = vmatpush1.msra.mxu0 %v284
        %344 = vmatprep.subr.mxu0 %v283
        %345 = vmatpush1.msra.mxu0 %v282
        %346 = vmatprep.subr.mxu0 %v281
        %347 = vmatpush1.msra.mxu0 %v280
        %348 = vmatprep.subr.mxu0 %v279
        %349 = vmatpush1.msra.mxu0 %v278
        %350 = vmatprep.subr.mxu0 %v277
        %351 = vmatpush1.msra.mxu0 %v276
        %352 = vmatprep.subr.mxu0 0.0
        %353 = vmatpush2.msra.mxu0 0.0
        %354 = vmatprep.subr.mxu0 0.0
        %355 = vmatpush2.msra.mxu0 0.0
        %356 = vmatprep.subr.mxu0 0.0
        %357 = vmatpush2.msra.mxu0 0.0
        %358 = vmatprep.subr.mxu0 0.0
        %359 = vmatpush2.msra.mxu0 0.0
        %360 = vmatprep.subr.mxu0 0.0
        %361 = vmatpush2.msra.mxu0 0.0
        %362 = vmatprep.subr.mxu0 0.0
        %363 = vmatpush2.msra.mxu0 0.0
        %364 = vmatprep.subr.mxu0 0.0
        %365 = vmatpush2.msra.mxu0 0.0
        %366 = vmatprep.subr.mxu0 0.0
        %367 = vmatpush2.msra.mxu0 0.0
        %368 = vmatprep.subr.mxu0 0.0
        %369 = vmatpush2.msra.mxu0 0.0
        %370 = vmatprep.subr.mxu0 0.0
        %371 = vmatpush2.msra.mxu0 0.0
        %372 = vmatprep.subr.mxu0 0.0
        %373 = vmatpush2.msra.mxu0 0.0
        %374 = vmatprep.subr.mxu0 0.0
        %375 = vmatpush2.msra.mxu0 0.0
        %376 = vmatprep.subr.mxu0 0.0
        %377 = vmatpush2.msra.mxu0 0.0
        %378 = vmatprep.subr.mxu0 0.0
        %379 = vmatpush2.msra.mxu0 0.0
        %380 = vmatprep.subr.mxu0 0.0
        %381 = vmatpush2.msra.mxu0 0.0
        %382 = vmatprep.subr.mxu0 0.0
        %383 = vmatpush2.msra.mxu0 0.0
        %384 = vmatprep.mubr.f32.mxu0 0.0
        %385 = vmatmul.mubr.f32.gmra.mxu0 %v274
        %v386 = vpop.f32.mrf.mxu0
        %v387 = vadd.f32 %v313, %v386
        %v388 = vpop.f32.mrf.mxu0
        %v389 = vadd.f32 %v317, %v388
        %390 = vmatprep.mubr.f32.mxu0 0.0
        %391 = vmatmul.mubr.f32.gmra.mxu0 %v275
        %v392 = vpop.f32.mrf.mxu0
        %v393 = vadd.f32 %v313, %v392
        %v394 = vpop.f32.mrf.mxu0
        %v395 = vadd.f32 %v317, %v394
        %396 = vdwg.mxu0
        %v397 = vmax.f32 %v387, 0.0
        %v398 = vmax.f32 %v389, 0.0
        %v399 = vmax.f32 %v393, 0.0
        %v400 = vmax.f32 %v395, 0.0
        %s401 = scalar_lea.vmem [#allocation7], 256
        %v402 = vld [vmem:[%s401] sm:$0xff]
        %v403 = vld [vmem:[%s401 + $0x8] sm:$0xff]
        %v404 = vld [vmem:[%s401 + $0x10] sm:$0xff]
        %v405 = vld [vmem:[%s401 + $0x18] sm:$0xff]
        %v406 = vld [vmem:[%s401 + $0x20] sm:$0xff]
        %v407 = vld [vmem:[%s401 + $0x28] sm:$0xff]
        %v408 = vld [vmem:[%s401 + $0x30] sm:$0xff]
        %v409 = vld [vmem:[%s401 + $0x38] sm:$0xff]
        %v410 = vld [vmem:[%s401 + $0x40] sm:$0xff]
        %v411 = vld [vmem:[%s401 + $0x48] sm:$0xff]
        %v412 = vld [vmem:[%s401 + $0x50] sm:$0xff]
        %v413 = vld [vmem:[%s401 + $0x58] sm:$0xff]
        %v414 = vld [vmem:[%s401 + $0x60] sm:$0xff]
        %v415 = vld [vmem:[%s401 + $0x68] sm:$0xff]
        %v416 = vld [vmem:[%s401 + $0x70] sm:$0xff]
        %v417 = vld [vmem:[%s401 + $0x78] sm:$0xff]
        %v418 = vld [vmem:[%s401 + $0x80] sm:$0xff]
        %v419 = vld [vmem:[%s401 + $0x88] sm:$0xff]
        %v420 = vld [vmem:[%s401 + $0x90] sm:$0xff]
        %v421 = vld [vmem:[%s401 + $0x98] sm:$0xff]
        %v422 = vld [vmem:[%s401 + $0xa0] sm:$0xff]
        %v423 = vld [vmem:[%s401 + $0xa8] sm:$0xff]
        %v424 = vld [vmem:[%s401 + $0xb0] sm:$0xff]
        %v425 = vld [vmem:[%s401 + $0xb8] sm:$0xff]
        %v426 = vld [vmem:[%s401 + $0xc0] sm:$0xff]
        %v427 = vld [vmem:[%s401 + $0xc8] sm:$0xff]
        %v428 = vld [vmem:[%s401 + $0xd0] sm:$0xff]
        %v429 = vld [vmem:[%s401 + $0xd8] sm:$0xff]
        %v430 = vld [vmem:[%s401 + $0xe0] sm:$0xff]
        %v431 = vld [vmem:[%s401 + $0xe8] sm:$0xff]
        %v432 = vld [vmem:[%s401 + $0xf0] sm:$0xff]
        %v433 = vld [vmem:[%s401 + $0xf8] sm:$0xff]
        %v434 = vld [vmem:[%s4] sm:$0x1]
        %v436 = vlaneseq
        %v437 = vshrl.u32 %v436, 7
        %v438 = vsub.s32 0, %v437
        %v439 = vrot.slane %v434, %v438
        %441 = vmatprep.subr.mxu0 0.0
        %442 = vmatpush1.msra.mxu0 %v417
        %443 = vmatprep.subr.mxu0 0.0
        %444 = vmatpush1.msra.mxu0 %v416
        %445 = vmatprep.subr.mxu0 0.0
        %446 = vmatpush1.msra.mxu0 %v415
        %447 = vmatprep.subr.mxu0 0.0
        %448 = vmatpush1.msra.mxu0 %v414
        %449 = vmatprep.subr.mxu0 0.0
        %450 = vmatpush1.msra.mxu0 %v413
        %451 = vmatprep.subr.mxu0 0.0
        %452 = vmatpush1.msra.mxu0 %v412
        %453 = vmatprep.subr.mxu0 0.0
        %454 = vmatpush1.msra.mxu0 %v411
        %455 = vmatprep.subr.mxu0 0.0
        %456 = vmatpush1.msra.mxu0 %v410
        %457 = vmatprep.subr.mxu0 0.0
        %458 = vmatpush1.msra.mxu0 %v409
        %459 = vmatprep.subr.mxu0 0.0
        %460 = vmatpush1.msra.mxu0 %v408
        %461 = vmatprep.subr.mxu0 0.0
        %462 = vmatpush1.msra.mxu0 %v407
        %463 = vmatprep.subr.mxu0 0.0
        %464 = vmatpush1.msra.mxu0 %v406
        %465 = vmatprep.subr.mxu0 0.0
        %466 = vmatpush1.msra.mxu0 %v405
        %467 = vmatprep.subr.mxu0 0.0
        %468 = vmatpush1.msra.mxu0 %v404
        %469 = vmatprep.subr.mxu0 0.0
        %470 = vmatpush1.msra.mxu0 %v403
        %471 = vmatprep.subr.mxu0 0.0
        %472 = vmatpush1.msra.mxu0 %v402
        %473 = vmatprep.subr.mxu0 0.0
        %474 = vmatpush2.msra.mxu0 %v433
        %475 = vmatprep.subr.mxu0 0.0
        %476 = vmatpush2.msra.mxu0 %v432
        %477 = vmatprep.subr.mxu0 0.0
        %478 = vmatpush2.msra.mxu0 %v431
        %479 = vmatprep.subr.mxu0 0.0
        %480 = vmatpush2.msra.mxu0 %v430
        %481 = vmatprep.subr.mxu0 0.0
        %482 = vmatpush2.msra.mxu0 %v429
        %483 = vmatprep.subr.mxu0 0.0
        %484 = vmatpush2.msra.mxu0 %v428
        %485 = vmatprep.subr.mxu0 0.0
        %486 = vmatpush2.msra.mxu0 %v427
        %487 = vmatprep.subr.mxu0 0.0
        %488 = vmatpush2.msra.mxu0 %v426
        %489 = vmatprep.subr.mxu0 0.0
        %490 = vmatpush2.msra.mxu0 %v425
        %491 = vmatprep.subr.mxu0 0.0
        %492 = vmatpush2.msra.mxu0 %v424
        %493 = vmatprep.subr.mxu0 0.0
        %494 = vmatpush2.msra.mxu0 %v423
        %495 = vmatprep.subr.mxu0 0.0
        %496 = vmatpush2.msra.mxu0 %v422
        %497 = vmatprep.subr.mxu0 0.0
        %498 = vmatpush2.msra.mxu0 %v421
        %499 = vmatprep.subr.mxu0 0.0
        %500 = vmatpush2.msra.mxu0 %v420
        %501 = vmatprep.subr.mxu0 0.0
        %502 = vmatpush2.msra.mxu0 %v419
        %503 = vmatprep.subr.mxu0 0.0
        %504 = vmatpush2.msra.mxu0 %v418
        %505 = vmatprep.mubr.f32.mxu0 %v398
        %506 = vmatmul.mubr.f32.gmra.mxu0 %v397
        %v507 = vpop.f32.mrf.mxu0
        %v508 = vadd.f32 %v439, %v507
        %v509 = vpop.f32.mrf.mxu0
        %510 = vmatprep.mubr.f32.mxu0 %v400
        %511 = vmatmul.mubr.f32.gmra.mxu0 %v399
        %v512 = vpop.f32.mrf.mxu0
        %v513 = vadd.f32 %v439, %v512
        %v514 = vpop.f32.mrf.mxu0
        %515 = vdwg.mxu0
        %v516 = vlaneseq
        %v517 = vshrl.u32 %v516, 7
        %v518 = vadd.s32 %v517, 8
        %v519 = vrot.slane %v397, 7
        %v520 = vrot.slane %v398, 7
        %v521 = vrot.slane %v399, 7
        %v522 = vrot.slane %v400, 7
        %vm523 = vcmp.lt.s32.totalorder %v517, 1
        %v524 = vsel %vm523, %v519, %v521
        %v525 = vsel %vm523, %v520, %v522
        %v526 = vsel %vm523, %v521, %v519
        %v527 = vsel %vm523, %v522, %v520
        %v528 = vadd.s32 %v517, 4294967295
        %v529 = vadd.s32 %v518, 4294967295
        %vm530 = vcmp.ge.s32.totalorder %v528, 0
        %vm531 = vcmp.ge.s32.totalorder %v529, 0
        %vm532 = vcmp.lt.s32.totalorder %v528, 16
        %vm533 = vcmp.lt.s32.totalorder %v529, 16
        %vm534 = vmand %vm530, %vm532
        %vm535 = vmand %vm531, %vm533
        %v536 = vsel %vm534, 1, 0
        %v537 = vsel %vm535, 1, 0
        %vm538 = vcmp.eq.s32.totalorder %v536, 1
        %vm539 = vcmp.eq.s32.totalorder %v537, 1
        %v540 = vsel %vm538, %v526, 0.0
        %v541 = vsel %vm538, %v527, 0.0
        %v542 = vsel %vm539, %v524, 0.0
        %v543 = vsel %vm539, %v525, 0.0
        %v544 = vld [vmem:[#allocation7] sm:$0xff]
        %v545 = vld [vmem:[#allocation7 + $0x8] sm:$0xff]
        %v546 = vld [vmem:[#allocation7 + $0x10] sm:$0xff]
        %v547 = vld [vmem:[#allocation7 + $0x18] sm:$0xff]
        %v548 = vld [vmem:[#allocation7 + $0x20] sm:$0xff]
        %v549 = vld [vmem:[#allocation7 + $0x28] sm:$0xff]
        %v550 = vld [vmem:[#allocation7 + $0x30] sm:$0xff]
        %v551 = vld [vmem:[#allocation7 + $0x38] sm:$0xff]
        %v552 = vld [vmem:[#allocation7 + $0x40] sm:$0xff]
        %v553 = vld [vmem:[#allocation7 + $0x48] sm:$0xff]
        %v554 = vld [vmem:[#allocation7 + $0x50] sm:$0xff]
        %v555 = vld [vmem:[#allocation7 + $0x58] sm:$0xff]
        %v556 = vld [vmem:[#allocation7 + $0x60] sm:$0xff]
        %v557 = vld [vmem:[#allocation7 + $0x68] sm:$0xff]
        %v558 = vld [vmem:[#allocation7 + $0x70] sm:$0xff]
        %v559 = vld [vmem:[#allocation7 + $0x78] sm:$0xff]
        %v560 = vld [vmem:[#allocation7 + $0x80] sm:$0xff]
        %v561 = vld [vmem:[#allocation7 + $0x88] sm:$0xff]
        %v562 = vld [vmem:[#allocation7 + $0x90] sm:$0xff]
        %v563 = vld [vmem:[#allocation7 + $0x98] sm:$0xff]
        %v564 = vld [vmem:[#allocation7 + $0xa0] sm:$0xff]
        %v565 = vld [vmem:[#allocation7 + $0xa8] sm:$0xff]
        %v566 = vld [vmem:[#allocation7 + $0xb0] sm:$0xff]
        %v567 = vld [vmem:[#allocation7 + $0xb8] sm:$0xff]
        %v568 = vld [vmem:[#allocation7 + $0xc0] sm:$0xff]
        %v569 = vld [vmem:[#allocation7 + $0xc8] sm:$0xff]
        %v570 = vld [vmem:[#allocation7 + $0xd0] sm:$0xff]
        %v571 = vld [vmem:[#allocation7 + $0xd8] sm:$0xff]
        %v572 = vld [vmem:[#allocation7 + $0xe0] sm:$0xff]
        %v573 = vld [vmem:[#allocation7 + $0xe8] sm:$0xff]
        %v574 = vld [vmem:[#allocation7 + $0xf0] sm:$0xff]
        %v575 = vld [vmem:[#allocation7 + $0xf8] sm:$0xff]
        %576 = vmatprep.subr.mxu0 0.0
        %577 = vmatpush1.msra.mxu0 %v559
        %578 = vmatprep.subr.mxu0 0.0
        %579 = vmatpush1.msra.mxu0 %v558
        %580 = vmatprep.subr.mxu0 0.0
        %581 = vmatpush1.msra.mxu0 %v557
        %582 = vmatprep.subr.mxu0 0.0
        %583 = vmatpush1.msra.mxu0 %v556
        %584 = vmatprep.subr.mxu0 0.0
        %585 = vmatpush1.msra.mxu0 %v555
        %586 = vmatprep.subr.mxu0 0.0
        %587 = vmatpush1.msra.mxu0 %v554
        %588 = vmatprep.subr.mxu0 0.0
        %589 = vmatpush1.msra.mxu0 %v553
        %590 = vmatprep.subr.mxu0 0.0
        %591 = vmatpush1.msra.mxu0 %v552
        %592 = vmatprep.subr.mxu0 0.0
        %593 = vmatpush1.msra.mxu0 %v551
        %594 = vmatprep.subr.mxu0 0.0
        %595 = vmatpush1.msra.mxu0 %v550
        %596 = vmatprep.subr.mxu0 0.0
        %597 = vmatpush1.msra.mxu0 %v549
        %598 = vmatprep.subr.mxu0 0.0
        %599 = vmatpush1.msra.mxu0 %v548
        %600 = vmatprep.subr.mxu0 0.0
        %601 = vmatpush1.msra.mxu0 %v547
        %602 = vmatprep.subr.mxu0 0.0
        %603 = vmatpush1.msra.mxu0 %v546
        %604 = vmatprep.subr.mxu0 0.0
        %605 = vmatpush1.msra.mxu0 %v545
        %606 = vmatprep.subr.mxu0 0.0
        %607 = vmatpush1.msra.mxu0 %v544
        %608 = vmatprep.subr.mxu0 0.0
        %609 = vmatpush2.msra.mxu0 %v575
        %610 = vmatprep.subr.mxu0 0.0
        %611 = vmatpush2.msra.mxu0 %v574
        %612 = vmatprep.subr.mxu0 0.0
        %613 = vmatpush2.msra.mxu0 %v573
        %614 = vmatprep.subr.mxu0 0.0
        %615 = vmatpush2.msra.mxu0 %v572
        %616 = vmatprep.subr.mxu0 0.0
        %617 = vmatpush2.msra.mxu0 %v571
        %618 = vmatprep.subr.mxu0 0.0
        %619 = vmatpush2.msra.mxu0 %v570
        %620 = vmatprep.subr.mxu0 0.0
        %621 = vmatpush2.msra.mxu0 %v569
        %622 = vmatprep.subr.mxu0 0.0
        %623 = vmatpush2.msra.mxu0 %v568
        %624 = vmatprep.subr.mxu0 0.0
        %625 = vmatpush2.msra.mxu0 %v567
        %626 = vmatprep.subr.mxu0 0.0
        %627 = vmatpush2.msra.mxu0 %v566
        %628 = vmatprep.subr.mxu0 0.0
        %629 = vmatpush2.msra.mxu0 %v565
        %630 = vmatprep.subr.mxu0 0.0
        %631 = vmatpush2.msra.mxu0 %v564
        %632 = vmatprep.subr.mxu0 0.0
        %633 = vmatpush2.msra.mxu0 %v563
        %634 = vmatprep.subr.mxu0 0.0
        %635 = vmatpush2.msra.mxu0 %v562
        %636 = vmatprep.subr.mxu0 0.0
        %637 = vmatpush2.msra.mxu0 %v561
        %638 = vmatprep.subr.mxu0 0.0
        %639 = vmatpush2.msra.mxu0 %v560
        %640 = vmatprep.mubr.f32.mxu0 %v541
        %641 = vmatmul.mubr.f32.gmra.mxu0 %v540
        %v642 = vpop.f32.mrf.mxu0
        %v643 = vadd.f32 0.0, %v642
        %v644 = vpop.f32.mrf.mxu0
        %645 = vmatprep.mubr.f32.mxu0 %v543
        %646 = vmatmul.mubr.f32.gmra.mxu0 %v542
        %v647 = vpop.f32.mrf.mxu0
        %v648 = vadd.f32 0.0, %v647
        %v649 = vpop.f32.mrf.mxu0
        %650 = vdwg.mxu0
        %v651 = vadd.f32 %v508, %v643
        %v652 = vadd.f32 %v513, %v648
        %v653 = vrot.slane %v397, 1
        %v654 = vrot.slane %v398, 1
        %v655 = vrot.slane %v399, 1
        %v656 = vrot.slane %v400, 1
        %vm657 = vcmp.lt.s32.totalorder %v517, 7
        %v658 = vsel %vm657, %v653, %v655
        %v659 = vsel %vm657, %v654, %v656
        %v660 = vsel %vm657, %v655, %v653
        %v661 = vsel %vm657, %v656, %v654
        %v662 = vadd.s32 %v517, 1
        %v663 = vadd.s32 %v518, 1
        %vm664 = vcmp.ge.s32.totalorder %v662, 0
        %vm665 = vcmp.ge.s32.totalorder %v663, 0
        %vm666 = vcmp.lt.s32.totalorder %v662, 16
        %vm667 = vcmp.lt.s32.totalorder %v663, 16
        %vm668 = vmand %vm664, %vm666
        %vm669 = vmand %vm665, %vm667
        %v670 = vsel %vm668, 1, 0
        %v671 = vsel %vm669, 1, 0
        %vm672 = vcmp.eq.s32.totalorder %v670, 1
        %vm673 = vcmp.eq.s32.totalorder %v671, 1
        %v674 = vsel %vm672, %v658, 0.0
        %v675 = vsel %vm672, %v659, 0.0
        %v676 = vsel %vm673, %v660, 0.0
        %v677 = vsel %vm673, %v661, 0.0
        %s678 = scalar_lea.vmem [#allocation7], 512
        %v679 = vld [vmem:[%s678] sm:$0xff]
        %v680 = vld [vmem:[%s678 + $0x8] sm:$0xff]
        %v681 = vld [vmem:[%s678 + $0x10] sm:$0xff]
        %v682 = vld [vmem:[%s678 + $0x18] sm:$0xff]
        %v683 = vld [vmem:[%s678 + $0x20] sm:$0xff]
        %v684 = vld [vmem:[%s678 + $0x28] sm:$0xff]
        %v685 = vld [vmem:[%s678 + $0x30] sm:$0xff]
        %v686 = vld [vmem:[%s678 + $0x38] sm:$0xff]
        %v687 = vld [vmem:[%s678 + $0x40] sm:$0xff]
        %v688 = vld [vmem:[%s678 + $0x48] sm:$0xff]
        %v689 = vld [vmem:[%s678 + $0x50] sm:$0xff]
        %v690 = vld [vmem:[%s678 + $0x58] sm:$0xff]
        %v691 = vld [vmem:[%s678 + $0x60] sm:$0xff]
        %v692 = vld [vmem:[%s678 + $0x68] sm:$0xff]
        %v693 = vld [vmem:[%s678 + $0x70] sm:$0xff]
        %v694 = vld [vmem:[%s678 + $0x78] sm:$0xff]
        %v695 = vld [vmem:[%s678 + $0x80] sm:$0xff]
        %v696 = vld [vmem:[%s678 + $0x88] sm:$0xff]
        %v697 = vld [vmem:[%s678 + $0x90] sm:$0xff]
        %v698 = vld [vmem:[%s678 + $0x98] sm:$0xff]
        %v699 = vld [vmem:[%s678 + $0xa0] sm:$0xff]
        %v700 = vld [vmem:[%s678 + $0xa8] sm:$0xff]
        %v701 = vld [vmem:[%s678 + $0xb0] sm:$0xff]
        %v702 = vld [vmem:[%s678 + $0xb8] sm:$0xff]
        %v703 = vld [vmem:[%s678 + $0xc0] sm:$0xff]
        %v704 = vld [vmem:[%s678 + $0xc8] sm:$0xff]
        %v705 = vld [vmem:[%s678 + $0xd0] sm:$0xff]
        %v706 = vld [vmem:[%s678 + $0xd8] sm:$0xff]
        %v707 = vld [vmem:[%s678 + $0xe0] sm:$0xff]
        %v708 = vld [vmem:[%s678 + $0xe8] sm:$0xff]
        %v709 = vld [vmem:[%s678 + $0xf0] sm:$0xff]
        %v710 = vld [vmem:[%s678 + $0xf8] sm:$0xff]
        %711 = vmatprep.subr.mxu0 0.0
        %712 = vmatpush1.msra.mxu0 %v694
        %713 = vmatprep.subr.mxu0 0.0
        %714 = vmatpush1.msra.mxu0 %v693
        %715 = vmatprep.subr.mxu0 0.0
        %716 = vmatpush1.msra.mxu0 %v692
        %717 = vmatprep.subr.mxu0 0.0
        %718 = vmatpush1.msra.mxu0 %v691
        %719 = vmatprep.subr.mxu0 0.0
        %720 = vmatpush1.msra.mxu0 %v690
        %721 = vmatprep.subr.mxu0 0.0
        %722 = vmatpush1.msra.mxu0 %v689
        %723 = vmatprep.subr.mxu0 0.0
        %724 = vmatpush1.msra.mxu0 %v688
        %725 = vmatprep.subr.mxu0 0.0
        %726 = vmatpush1.msra.mxu0 %v687
        %727 = vmatprep.subr.mxu0 0.0
        %728 = vmatpush1.msra.mxu0 %v686
        %729 = vmatprep.subr.mxu0 0.0
        %730 = vmatpush1.msra.mxu0 %v685
        %731 = vmatprep.subr.mxu0 0.0
        %732 = vmatpush1.msra.mxu0 %v684
        %733 = vmatprep.subr.mxu0 0.0
        %734 = vmatpush1.msra.mxu0 %v683
        %735 = vmatprep.subr.mxu0 0.0
        %736 = vmatpush1.msra.mxu0 %v682
        %737 = vmatprep.subr.mxu0 0.0
        %738 = vmatpush1.msra.mxu0 %v681
        %739 = vmatprep.subr.mxu0 0.0
        %740 = vmatpush1.msra.mxu0 %v680
        %741 = vmatprep.subr.mxu0 0.0
        %742 = vmatpush1.msra.mxu0 %v679
        %743 = vmatprep.subr.mxu0 0.0
        %744 = vmatpush2.msra.mxu0 %v710
        %745 = vmatprep.subr.mxu0 0.0
        %746 = vmatpush2.msra.mxu0 %v709
        %747 = vmatprep.subr.mxu0 0.0
        %748 = vmatpush2.msra.mxu0 %v708
        %749 = vmatprep.subr.mxu0 0.0
        %750 = vmatpush2.msra.mxu0 %v707
        %751 = vmatprep.subr.mxu0 0.0
        %752 = vmatpush2.msra.mxu0 %v706
        %753 = vmatprep.subr.mxu0 0.0
        %754 = vmatpush2.msra.mxu0 %v705
        %755 = vmatprep.subr.mxu0 0.0
        %756 = vmatpush2.msra.mxu0 %v704
        %757 = vmatprep.subr.mxu0 0.0
        %758 = vmatpush2.msra.mxu0 %v703
        %759 = vmatprep.subr.mxu0 0.0
        %760 = vmatpush2.msra.mxu0 %v702
        %761 = vmatprep.subr.mxu0 0.0
        %762 = vmatpush2.msra.mxu0 %v701
        %763 = vmatprep.subr.mxu0 0.0
        %764 = vmatpush2.msra.mxu0 %v700
        %765 = vmatprep.subr.mxu0 0.0
        %766 = vmatpush2.msra.mxu0 %v699
        %767 = vmatprep.subr.mxu0 0.0
        %768 = vmatpush2.msra.mxu0 %v698
        %769 = vmatprep.subr.mxu0 0.0
        %770 = vmatpush2.msra.mxu0 %v697
        %771 = vmatprep.subr.mxu0 0.0
        %772 = vmatpush2.msra.mxu0 %v696
        %773 = vmatprep.subr.mxu0 0.0
        %774 = vmatpush2.msra.mxu0 %v695
        %775 = vmatprep.mubr.f32.mxu0 %v675
        %776 = vmatmul.mubr.f32.gmra.mxu0 %v674
        %v777 = vpop.f32.mrf.mxu0
        %v778 = vadd.f32 0.0, %v777
        %v779 = vpop.f32.mrf.mxu0
        %780 = vmatprep.mubr.f32.mxu0 %v677
        %781 = vmatmul.mubr.f32.gmra.mxu0 %v676
        %v782 = vpop.f32.mrf.mxu0
        %v783 = vadd.f32 0.0, %v782
        %v784 = vpop.f32.mrf.mxu0
        %785 = vdwg.mxu0
        %v786 = vadd.f32 %v651, %v778
        %v787 = vadd.f32 %v652, %v783
        %788 = vst [vmem:[%s271] sm:$0xff] %v786
        %789 = vst [vmem:[%s271 + $0x8] sm:$0xff] %v787
        %s790 = sand.u32 %s141, 1
        %s791 = scalar_lea.sflag [#allocation4], %s790
        %s792 = sand.u32 %s141, 1
        %s793 = smul.addr %s792, 16
        %s794 = scalar_lea.vmem [#allocation8], %s793
        // Predicated region
        $region53: #{tpu_custom_call.1} parent=39 // pred_check
          %p795 = pneg %p151
        $region54: #{tpu_custom_call.1} parent=39 // pred_check_branch
          %797 = sbr.rel (%p795) target = $region56
        $region55: #{tpu_custom_call.1} parent=39 // pred_region
          %s798 = smul.u32 2, %s23
          %s800 = ssub.s32 256, 256
          %801 = vsyncadd %s791, %s800
          %s802 = smul.addr %s798, 128
          %s803 = scalar_lea.hbm %s5, %s802
          %s804 = sshll.u32 %s794, 4
          %s805 = int_to_ptr.vmem [resolvable:$true] %s804
          %810 = dma.vmem_to_hbm [thread:$0]  %s805, 256, %s803, %s791, 128, 128, 8
        $region56: #{tpu_custom_call.1} parent=39 // pred_fallthru
          _
      $region40: #{tpu_custom_call.1} parent=5 // pred_fallthru
        _
      %p811 = scmp.le.s32.totalorder 2, %s18
      // Predicated region
      $region57: #{tpu_custom_call.1} parent=5 // pred_check
        %p812 = pneg %p811
      $region58: #{tpu_custom_call.1} parent=5 // pred_check_branch
        %814 = sbr.rel (%p812) target = $region60
      $region59: #{tpu_custom_call.1} parent=5 // pred_region
        %s815 = ssub.s32 %s18, 2
        // Predicated region
        $region61: #{tpu_custom_call.1} parent=59 // pred_check
          %p816 = pneg %p157
        $region62: #{tpu_custom_call.1} parent=59 // pred_check_branch
          %818 = sbr.rel (%p816) target = $region64
        $region63: #{tpu_custom_call.1} parent=59 // pred_region
          %s819 = sand.u32 %s142, 1
          %s820 = scalar_lea.sflag [#allocation4], %s819
          %s821 = sand.u32 %s142, 1
          %s822 = smul.addr %s821, 16
          %s823 = scalar_lea.vmem [#allocation8], %s822
          %824 = dma.done %s820, 256
        $region64: #{tpu_custom_call.1} parent=59 // pred_fallthru
          _
      $region60: #{tpu_custom_call.1} parent=5 // pred_fallthru
        _
    $region6: #{tpu_custom_call.1} parent=1 // loop_footer
      %s22 = sadd.s32 1, %s18
    $region7: #{tpu_custom_call.1} parent=1 // loop_footer_branch
      %17 = sbr.rel target = $region3
    $region8: #{tpu_custom_call.1} parent=1 // loop_exit
      _
    %825 = vsyncpa [#allocation3], 1
    %s826 = scalar_lea.sflag [#allocation3], 1
    %827 = vsyncpa %s826, 1
    %828 = vsyncpa [#allocation6], 1
    %829 = vsyncpa [#allocation4], 1
    %s830 = scalar_lea.sflag [#allocation4], 1
    %831 = vsyncpa %s830, 1

</llo_original>
